<compile_context>
chip_gen: v6e
topology: v6e:2x2x1
jax: 0.10.0
libtpu: 0.0.40
codegen_flags: <defaults>
</compile_context>

<pallas_src>
import functools
import math

import jax
import jax.numpy as jnp
from jax import lax
from jax.experimental import pallas as pl

PARAM_DIM = 62        # true 62-d 3DMM parameter width
PPAD = 128            # lane-padded parameter width
U_COL = 62            # padded column carrying the constant 1 that folds u into the matmul
MAGIC = 0.00057339936
EPS = 1e-6
LANE = 128
SUB = 8


def wpdc_kernel(inp_ref, tgt_ref, mean_ref, std_ref, blk_ref, wT_ref, wnm_ref,
                mask_ref, out_ref, *, k3, inv_denom):
    """Single-step fused WPDC loss: both (left/right) sides in one invocation."""
    inp2x = inp_ref[...]     # (2N, 256): [params | params] lane-tiled; rows = [left batch | right batch]
    tgt2x = tgt_ref[...]     # (2N, 256)
    mean2x = mean_ref[...]   # (1, 256)  mean[U_COL] == 1 in each half, padded cols == 0
    std2x = std_ref[...]     # (1, 256)  std[U_COL] == 0 in each half, padded cols == 0
    blk = blk_ref[...]       # (2N, 256) block-diag placement mask (left rows [1|0], right rows [0|1])
    wT = wT_ref[...]         # (256, K)  block-diag basis; row U_COL of each half holds u_base
    wnm = wnm_ref[...]       # (2, 128)  MAGIC * per-side basis column norms
    masks = mask_ref[...]    # (5, 128)  [mask_x, mask_y, mask_z, sqrt(Kv)*mask_off, mask_eps]

    # de-normalize (reconstruct_and_parse + explicit re-denorm in the loss).
    # Padded columns stay 0; column U_COL becomes exactly 1.0.
    p2x = inp2x * std2x + mean2x
    pg2x = tgt2x * std2x + mean2x

    # ONE MXU pass for both sides: left rows only hit basis rows 0..127, right
    # rows only rows 128..255 (blk zeroes the off-block half).  The constant-1
    # column picks up the u_base row, so tmp = u + w_shp@a_shp + w_exp@a_exp.
    tmp = jnp.dot(p2x * blk, wT, preferred_element_type=jnp.float32,
                  precision=lax.Precision.HIGHEST)            # (2N, K)

    # Per-coordinate (x / y / z) vertex norms.  Columns are grouped host-side
    # as [x-block | y-block | z-block], each zero-padded to a 128-lane
    # multiple -> contiguous lane-aligned reductions; padded lanes give 0.
    sq = tmp * tmp
    n0 = jnp.sqrt(jnp.sum(sq[:, 0 * k3:1 * k3], axis=1, keepdims=True))
    n1 = jnp.sqrt(jnp.sum(sq[:, 1 * k3:2 * k3], axis=1, keepdims=True))
    n2 = jnp.sqrt(jnp.sum(sq[:, 2 * k3:3 * k3], axis=1, keepdims=True))

    # 128-lane-wide weights section (slices are at a 128-lane boundary -> cheap)
    param = p2x[:, :PPAD]
    param_gt = pg2x[:, :PPAD]
    sm = blk[:, :PPAD]                     # 1.0 on left rows, 0.0 on right rows

    mx = masks[0:1]
    my = masks[1:2]
    mz = masks[2:3]
    mo = masks[3:4]                        # already scaled by offset_norm = sqrt(Kv)
    meps = masks[4:5]                      # 1 on cols 0..10 and 12..61, else 0

    pose_mult = n0 * mx + n1 * my + n2 * mz + mo          # (2N, 128)
    wnm_rows = sm * wnm[0:1] + (1.0 - sm) * wnm[1:2]      # per-row side-selected MAGIC*||w||

    diff = jnp.abs(param - param_gt)
    # col 11 and padded cols stay exactly 0 (masks/wn are 0 there, diff is 0)
    weights = diff * (pose_mult + wnm_rows) + EPS * meps
    maxes = jnp.max(weights, axis=1, keepdims=True)
    # row-max normalization via EUP approximate reciprocal (~1e-4-level bias)
    weights = weights * pl.reciprocal(maxes, approx=True)

    d = inp2x[:, :PPAD] - tgt2x[:, :PPAD]  # loss uses the *normalized* params; padded cols give 0
    s = jnp.sum(weights * d * d, keepdims=True) * inv_denom   # (1,1), already /(N*62)
    out_ref[...] = jnp.broadcast_to(s, out_ref.shape)          # lane-dense (8,128) store


def wpdc_loss(inp2x, tgt2x, mean2x, std2x, blk, wT_blk, wnm2, masks, *, kv_pad, n_batch):
    """Fused left+right WPDC loss in a single pallas_call invocation."""
    kernel = functools.partial(wpdc_kernel, k3=kv_pad,
                               inv_denom=1.0 / (n_batch * PARAM_DIM))
    out = pl.pallas_call(
        kernel,
        out_shape=jax.ShapeDtypeStruct((SUB, LANE), jnp.float32),
    )(inp2x, tgt2x, mean2x, std2x, blk, wT_blk, wnm2, masks)
    # scalar slice only -- no reduce epilogue
    return out[0, 0]
    # TODO(synk): if N grows by orders of magnitude, add a grid over the row
    # axis with an (8,128) accumulator tile + pl.when init/finalize.


def build_side_basis(u, w_shp, w_exp, kpt_verts, resample_num, key):
    """Host-side glue: torch.randperm + keypoint mix + row gather + grouping.

    Returns the (PPAD, K) lane-aligned, coordinate-grouped basis for ONE side
    (rows 12..51 = w_shp, 52..61 = w_exp, row U_COL = u_base), the (PPAD,)
    basis column norms, Kv, and the raw grouped gather (for the reference)."""
    V = w_shp.shape[0] // 3
    # TODO(synk): torch.randperm has no in-kernel equivalent; done with jax.random host-side.
    resample_verts = jax.random.permutation(key, V)[:resample_num]
    verts = jnp.concatenate([kpt_verts, resample_verts]).astype(jnp.int32)   # (Kv,)
    kv = int(verts.shape[0])
    kv_pad = ((kv + LANE - 1) // LANE) * LANE

    # grouped coordinate layout: columns [all x | all y | all z]
    idx = jnp.concatenate([3 * verts, 3 * verts + 1, 3 * verts + 2])         # (3*Kv,)
    u_g = u[idx, 0]                  # (3*Kv,)
    w_shp_g = w_shp[idx]             # (3*Kv, 40)
    w_exp_g = w_exp[idx]             # (3*Kv, 10)

    def pad_groups(x):               # (3*Kv, C) -> (3*kv_pad, C), zero-pad each group
        x3 = x.reshape(3, kv, -1)
        x3 = jnp.pad(x3, ((0, 0), (0, kv_pad - kv), (0, 0)))
        return x3.reshape(3 * kv_pad, -1)

    K = 3 * kv_pad
    basis = jnp.zeros((PPAD, K), jnp.float32)
    basis = basis.at[12:52, :].set(pad_groups(w_shp_g).T)
    basis = basis.at[52:62, :].set(pad_groups(w_exp_g).T)
    basis = basis.at[U_COL, :].set(pad_groups(u_g[:, None])[:, 0])           # u via const-1 col

    wn = jnp.zeros((PPAD,), jnp.float32)
    wn = wn.at[12:52].set(jnp.linalg.norm(w_shp_g, axis=0))
    wn = wn.at[52:62].set(jnp.linalg.norm(w_exp_g, axis=0))
    return basis, wn, kv, u_g, w_shp_g, w_exp_g


# ---------------- pure-JAX reference (mirrors the torch code) ----------------
def ref_weights(inp, tgt, mean, std, u_g, w_shp_g, w_exp_g, kv):
    N = inp.shape[0]
    hp = jax.lax.Precision.HIGHEST
    param = inp * std + mean
    param_gt = tgt * std + mean
    tmpv = (u_g[None, :]
            + jnp.einsum('nd,kd->nk', param[:, 12:52], w_shp_g, precision=hp)
            + jnp.einsum('nd,kd->nk', param[:, 52:], w_exp_g, precision=hp))   # (N, 3*Kv), grouped
    tmpv_norm = jnp.linalg.norm(tmpv.reshape(N, 3, kv), axis=2)                # (N, 3)
    offset_norm = math.sqrt(kv)
    pd_pose = jnp.abs(param[:, :11] - param_gt[:, :11])
    weights = jnp.zeros((N, PARAM_DIM), jnp.float32)
    for ind in range(11):
        if ind in (0, 4, 8):
            m = tmpv_norm[:, 0]
        elif ind in (1, 5, 9):
            m = tmpv_norm[:, 1]
        elif ind in (2, 6, 10):
            m = tmpv_norm[:, 2]
        else:
            m = offset_norm
        weights = weights.at[:, ind].set(pd_pose[:, ind] * m)
    pd_se = jnp.abs(param[:, 12:] - param_gt[:, 12:])
    wcat = jnp.concatenate([w_shp_g, w_exp_g], axis=1)
    wnorm = jnp.linalg.norm(wcat, axis=0)
    weights = weights.at[:, 12:].set(MAGIC * pd_se * wnorm)
    weights = weights.at[:, :11].add(EPS)
    weights = weights.at[:, 12:].add(EPS)
    maxes = weights.max(axis=1, keepdims=True)
    weights = weights / maxes
    weights = weights.at[:, 11].set(0.0)
    return weights


if __name__ == "__main__":
    key = jax.random.PRNGKey(0)
    ks = jax.random.split(key, 12)

    # ---- small synthetic "morphable model" buffers (deterministic init) ----
    N = 2                 # batch
    V = 48                # vertices -> L = 144 flattened coords
    L = 3 * V
    N_KPT = 16            # keypoint vertices (original module uses 68)
    RESAMPLE = 8          # resampled vertices (original default 132)

    param_mean = (0.1 * jax.random.normal(ks[0], (PARAM_DIM,))).astype(jnp.float32)
    param_std = (0.5 + jnp.abs(jax.random.normal(ks[1], (PARAM_DIM,)))).astype(jnp.float32)
    u = jax.random.normal(ks[2], (L, 1), jnp.float32)
    w_shp = 0.1 * jax.random.normal(ks[3], (L, 40), jnp.float32)
    w_exp = 0.1 * jax.random.normal(ks[4], (L, 10), jnp.float32)
    kpt_verts = jnp.arange(N_KPT, dtype=jnp.int32) * 3        # keypoint vertex ids (< V)

    # ---- example inputs (normalized 62-d params) ----
    input_l = 0.5 * jax.random.normal(ks[5], (N, PARAM_DIM), jnp.float32)
    input_r = 0.5 * jax.random.normal(ks[6], (N, PARAM_DIM), jnp.float32)
    target_l = 0.5 * jax.random.normal(ks[7], (N, PARAM_DIM), jnp.float32)
    target_r = 0.5 * jax.random.normal(ks[8], (N, PARAM_DIM), jnp.float32)

    # one independent resample per side (mirrors the two torch.randperm calls)
    basisL, wnL, kvL, uLg, wshpLg, wexpLg = build_side_basis(
        u, w_shp, w_exp, kpt_verts, RESAMPLE, ks[9])
    basisR, wnR, kvR, uRg, wshpRg, wexpRg = build_side_basis(
        u, w_shp, w_exp, kpt_verts, RESAMPLE, ks[10])
    assert kvL == kvR and basisL.shape == basisR.shape
    kv = kvL
    kv_pad = basisL.shape[1] // 3
    offset_norm = math.sqrt(kv)

    # ---- host-side packing for the fused kernel ----
    def pad_params(x):                      # (..., 62) -> (..., 128) zero-padded
        return jnp.pad(x, [(0, 0)] * (x.ndim - 1) + [(0, PPAD - PARAM_DIM)])

    def tile2(x):                           # (..., 128) -> (..., 256) lane-tiled twice
        return jnp.concatenate([x, x], axis=-1)

    inp_pad = pad_params(jnp.concatenate([input_l, input_r], axis=0))       # (2N, 128)
    tgt_pad = pad_params(jnp.concatenate([target_l, target_r], axis=0))
    inp2x = tile2(inp_pad)                                                  # (2N, 256)
    tgt2x = tile2(tgt_pad)
    mean2x = tile2(pad_params(param_mean[None, :]).at[0, U_COL].set(1.0))   # (1, 256)
    std2x = tile2(pad_params(param_std[None, :]))                           # std[U_COL] stays 0
    blk = jnp.concatenate(
        [jnp.concatenate([jnp.ones((N, PPAD), jnp.float32), jnp.zeros((N, PPAD), jnp.float32)], axis=1),
         jnp.concatenate([jnp.zeros((N, PPAD), jnp.float32), jnp.ones((N, PPAD), jnp.float32)], axis=1)],
        axis=0)                                                             # (2N, 256)
    wT_blk = jnp.concatenate([basisL, basisR], axis=0)                      # (256, K)
    wnm2 = MAGIC * jnp.stack([wnL, wnR])                                    # (2, 128)

    mask_x = jnp.zeros((PPAD,), jnp.float32).at[jnp.array([0, 4, 8])].set(1.0)
    mask_y = jnp.zeros((PPAD,), jnp.float32).at[jnp.array([1, 5, 9])].set(1.0)
    mask_z = jnp.zeros((PPAD,), jnp.float32).at[jnp.array([2, 6, 10])].set(1.0)
    mask_o = jnp.zeros((PPAD,), jnp.float32).at[jnp.array([3, 7])].set(float(offset_norm))
    mask_eps = jnp.zeros((PPAD,), jnp.float32).at[:11].set(1.0).at[12:PARAM_DIM].set(1.0)
    masks = jnp.stack([mask_x, mask_y, mask_z, mask_o, mask_eps])           # (5, 128)

    # ---- Pallas kernel path (single fused call, both sides) ----
    loss = wpdc_loss(inp2x, tgt2x, mean2x, std2x, blk, wT_blk, wnm2, masks,
                     kv_pad=kv_pad, n_batch=N)
    loss = jax.block_until_ready(loss)

    # ---- reference check ----
    mean2d = param_mean[None, :]
    std2d = param_std[None, :]
    w_ref_l = ref_weights(input_l, target_l, mean2d, std2d, uLg, wshpLg, wexpLg, kvL)
    w_ref_r = ref_weights(input_r, target_r, mean2d, std2d, uRg, wshpRg, wexpRg, kvR)
    loss_ref = jnp.mean(w_ref_l * (input_l - target_l) ** 2
                        + w_ref_r * (input_r - target_r) ** 2)
    loss_ref = jax.block_until_ready(loss_ref)

    assert jnp.isfinite(loss), "kernel produced non-finite loss"
    # HIGHEST-precision matmul; only the approx reciprocal (~1e-4 level) and op
    # ordering differ from the reference -- well inside a 1e-2 relative tolerance.
    assert abs(float(loss) - float(loss_ref)) <= 1e-2 * max(1e-6, abs(float(loss_ref))), (
        f"mismatch: pallas={float(loss)} ref={float(loss_ref)}")

    print("KERNEL_OK")
</pallas_src>

<mosaic_0001>
module attributes {stable_mosaic.version = 11 : i64} {
  func.func @wpdc_kernel(%arg0: memref<4x256xf32, #tpu.memory_space<vmem>>, %arg1: memref<4x256xf32, #tpu.memory_space<vmem>>, %arg2: memref<1x256xf32, #tpu.memory_space<vmem>>, %arg3: memref<1x256xf32, #tpu.memory_space<vmem>>, %arg4: memref<4x256xf32, #tpu.memory_space<vmem>>, %arg5: memref<256x384xf32, #tpu.memory_space<vmem>>, %arg6: memref<2x128xf32, #tpu.memory_space<vmem>>, %arg7: memref<5x128xf32, #tpu.memory_space<vmem>>, %arg8: memref<8x128xf32, #tpu.memory_space<vmem>>) attributes {dimension_semantics = [], scalar_prefetch = 0 : i64, scratch_operands = 0 : i64, tpu.core_type = #tpu.core_type<tc>} {
    %c0 = arith.constant 0 : index
    %c0_0 = arith.constant 0 : index
    %0 = vector.load %arg0[%c0, %c0_0] : memref<4x256xf32, #tpu.memory_space<vmem>>, vector<4x256xf32>
    %c0_1 = arith.constant 0 : index
    %c0_2 = arith.constant 0 : index
    %1 = vector.load %arg1[%c0_1, %c0_2] : memref<4x256xf32, #tpu.memory_space<vmem>>, vector<4x256xf32>
    %c0_3 = arith.constant 0 : index
    %c0_4 = arith.constant 0 : index
    %2 = vector.load %arg2[%c0_3, %c0_4] : memref<1x256xf32, #tpu.memory_space<vmem>>, vector<1x256xf32>
    %c0_5 = arith.constant 0 : index
    %c0_6 = arith.constant 0 : index
    %3 = vector.load %arg3[%c0_5, %c0_6] : memref<1x256xf32, #tpu.memory_space<vmem>>, vector<1x256xf32>
    %c0_7 = arith.constant 0 : index
    %c0_8 = arith.constant 0 : index
    %4 = vector.load %arg4[%c0_7, %c0_8] : memref<4x256xf32, #tpu.memory_space<vmem>>, vector<4x256xf32>
    %c0_9 = arith.constant 0 : index
    %c0_10 = arith.constant 0 : index
    %5 = vector.load %arg5[%c0_9, %c0_10] : memref<256x384xf32, #tpu.memory_space<vmem>>, vector<256x384xf32>
    %c0_11 = arith.constant 0 : index
    %c0_12 = arith.constant 0 : index
    %6 = vector.load %arg6[%c0_11, %c0_12] : memref<2x128xf32, #tpu.memory_space<vmem>>, vector<2x128xf32>
    %c0_13 = arith.constant 0 : index
    %c0_14 = arith.constant 0 : index
    %7 = vector.load %arg7[%c0_13, %c0_14] : memref<5x128xf32, #tpu.memory_space<vmem>>, vector<5x128xf32>
    %8 = vector.broadcast %3 : vector<1x256xf32> to vector<4x256xf32>
    %9 = arith.mulf %0, %8 : vector<4x256xf32>
    %10 = vector.broadcast %2 : vector<1x256xf32> to vector<4x256xf32>
    %11 = arith.addf %9, %10 : vector<4x256xf32>
    %12 = vector.broadcast %3 : vector<1x256xf32> to vector<4x256xf32>
    %13 = arith.mulf %1, %12 : vector<4x256xf32>
    %14 = vector.broadcast %2 : vector<1x256xf32> to vector<4x256xf32>
    %15 = arith.addf %13, %14 : vector<4x256xf32>
    %16 = arith.mulf %11, %4 : vector<4x256xf32>
    %cst = arith.constant dense<0.000000e+00> : vector<4x384xf32>
    %17 = tpu.matmul %16, %5, %cst {dimension_numbers = #tpu.dot_dimension_numbers<[1], [0], [0], [1], [0, 0, 1, 1], [], []>, precision = #tpu.contract_precision<fp32>} : vector<4x256xf32>, vector<256x384xf32>, vector<4x384xf32> -> vector<4x384xf32>
    %18 = arith.mulf %17, %17 : vector<4x384xf32>
    %19 = vector.extract_strided_slice %18 {offsets = [0, 0], sizes = [4, 128], strides = [1, 1]} : vector<4x384xf32> to vector<4x128xf32>
    %cst_15 = arith.constant dense<0.000000e+00> : vector<4xf32>
    %20 = vector.multi_reduction <add>, %19, %cst_15 [1] : vector<4x128xf32> to vector<4xf32>
    %21 = vector.shape_cast %20 : vector<4xf32> to vector<4x1xf32>
    %22 = math.sqrt %21 : vector<4x1xf32>
    %23 = vector.extract_strided_slice %18 {offsets = [0, 128], sizes = [4, 128], strides = [1, 1]} : vector<4x384xf32> to vector<4x128xf32>
    %cst_16 = arith.constant dense<0.000000e+00> : vector<4xf32>
    %24 = vector.multi_reduction <add>, %23, %cst_16 [1] : vector<4x128xf32> to vector<4xf32>
    %25 = vector.shape_cast %24 : vector<4xf32> to vector<4x1xf32>
    %26 = math.sqrt %25 : vector<4x1xf32>
    %27 = vector.extract_strided_slice %18 {offsets = [0, 256], sizes = [4, 128], strides = [1, 1]} : vector<4x384xf32> to vector<4x128xf32>
    %cst_17 = arith.constant dense<0.000000e+00> : vector<4xf32>
    %28 = vector.multi_reduction <add>, %27, %cst_17 [1] : vector<4x128xf32> to vector<4xf32>
    %29 = vector.shape_cast %28 : vector<4xf32> to vector<4x1xf32>
    %30 = math.sqrt %29 : vector<4x1xf32>
    %31 = vector.extract_strided_slice %11 {offsets = [0, 0], sizes = [4, 128], strides = [1, 1]} : vector<4x256xf32> to vector<4x128xf32>
    %32 = vector.extract_strided_slice %15 {offsets = [0, 0], sizes = [4, 128], strides = [1, 1]} : vector<4x256xf32> to vector<4x128xf32>
    %33 = vector.extract_strided_slice %4 {offsets = [0, 0], sizes = [4, 128], strides = [1, 1]} : vector<4x256xf32> to vector<4x128xf32>
    %34 = vector.extract_strided_slice %7 {offsets = [0, 0], sizes = [1, 128], strides = [1, 1]} : vector<5x128xf32> to vector<1x128xf32>
    %35 = vector.extract_strided_slice %7 {offsets = [1, 0], sizes = [1, 128], strides = [1, 1]} : vector<5x128xf32> to vector<1x128xf32>
    %36 = vector.extract_strided_slice %7 {offsets = [2, 0], sizes = [1, 128], strides = [1, 1]} : vector<5x128xf32> to vector<1x128xf32>
    %37 = vector.extract_strided_slice %7 {offsets = [3, 0], sizes = [1, 128], strides = [1, 1]} : vector<5x128xf32> to vector<1x128xf32>
    %38 = vector.extract_strided_slice %7 {offsets = [4, 0], sizes = [1, 128], strides = [1, 1]} : vector<5x128xf32> to vector<1x128xf32>
    %39 = vector.broadcast %22 : vector<4x1xf32> to vector<4x128xf32>
    %40 = vector.broadcast %34 : vector<1x128xf32> to vector<4x128xf32>
    %41 = arith.mulf %39, %40 : vector<4x128xf32>
    %42 = vector.broadcast %26 : vector<4x1xf32> to vector<4x128xf32>
    %43 = vector.broadcast %35 : vector<1x128xf32> to vector<4x128xf32>
    %44 = arith.mulf %42, %43 : vector<4x128xf32>
    %45 = arith.addf %41, %44 : vector<4x128xf32>
    %46 = vector.broadcast %30 : vector<4x1xf32> to vector<4x128xf32>
    %47 = vector.broadcast %36 : vector<1x128xf32> to vector<4x128xf32>
    %48 = arith.mulf %46, %47 : vector<4x128xf32>
    %49 = arith.addf %45, %48 : vector<4x128xf32>
    %50 = vector.broadcast %37 : vector<1x128xf32> to vector<4x128xf32>
    %51 = arith.addf %49, %50 : vector<4x128xf32>
    %52 = vector.extract_strided_slice %6 {offsets = [0, 0], sizes = [1, 128], strides = [1, 1]} : vector<2x128xf32> to vector<1x128xf32>
    %53 = vector.broadcast %52 : vector<1x128xf32> to vector<4x128xf32>
    %54 = arith.mulf %33, %53 : vector<4x128xf32>
    %cst_18 = arith.constant 1.000000e+00 : f32
    %55 = vector.broadcast %cst_18 : f32 to vector<4x128xf32>
    %56 = arith.subf %55, %33 : vector<4x128xf32>
    %57 = vector.extract_strided_slice %6 {offsets = [1, 0], sizes = [1, 128], strides = [1, 1]} : vector<2x128xf32> to vector<1x128xf32>
    %58 = vector.broadcast %57 : vector<1x128xf32> to vector<4x128xf32>
    %59 = arith.mulf %56, %58 : vector<4x128xf32>
    %60 = arith.addf %54, %59 : vector<4x128xf32>
    %61 = arith.subf %31, %32 : vector<4x128xf32>
    %62 = math.absf %61 : vector<4x128xf32>
    %63 = arith.addf %51, %60 : vector<4x128xf32>
    %64 = arith.mulf %62, %63 : vector<4x128xf32>
    %cst_19 = arith.constant 9.99999997E-7 : f32
    %65 = vector.broadcast %cst_19 : f32 to vector<1x128xf32>
    %66 = arith.mulf %65, %38 : vector<1x128xf32>
    %67 = vector.broadcast %66 : vector<1x128xf32> to vector<4x128xf32>
    %68 = arith.addf %64, %67 : vector<4x128xf32>
    %cst_20 = arith.constant dense<0xFF800000> : vector<4xf32>
    %69 = vector.multi_reduction <maximumf>, %68, %cst_20 [1] : vector<4x128xf32> to vector<4xf32>
    %70 = vector.shape_cast %69 : vector<4xf32> to vector<4x1xf32>
    %71 = tpu.reciprocal %70 {approx = true} : vector<4x1xf32> -> vector<4x1xf32>
    %72 = vector.broadcast %71 : vector<4x1xf32> to vector<4x128xf32>
    %73 = arith.mulf %68, %72 : vector<4x128xf32>
    %74 = vector.extract_strided_slice %0 {offsets = [0, 0], sizes = [4, 128], strides = [1, 1]} : vector<4x256xf32> to vector<4x128xf32>
    %75 = vector.extract_strided_slice %1 {offsets = [0, 0], sizes = [4, 128], strides = [1, 1]} : vector<4x256xf32> to vector<4x128xf32>
    %76 = arith.subf %74, %75 : vector<4x128xf32>
    %77 = arith.mulf %73, %76 : vector<4x128xf32>
    %78 = arith.mulf %77, %76 : vector<4x128xf32>
    %79 = vector.shape_cast %78 : vector<4x128xf32> to vector<1x4x128xf32>
    %cst_21 = arith.constant dense<0.000000e+00> : vector<1xf32>
    %80 = vector.multi_reduction <add>, %79, %cst_21 [1, 2] : vector<1x4x128xf32> to vector<1xf32>
    %81 = vector.shape_cast %80 : vector<1xf32> to vector<1x1x1xf32>
    %82 = vector.extract %81[0, 0, 0] : f32 from vector<1x1x1xf32>
    %83 = vector.broadcast %82 : f32 to vector<1x1xf32>
    %cst_22 = arith.constant 0.00806451589 : f32
    %84 = vector.broadcast %cst_22 : f32 to vector<1x1xf32>
    %85 = arith.mulf %83, %84 : vector<1x1xf32>
    %86 = vector.shape_cast %85 : vector<1x1xf32> to vector<1x1xf32>
    %87 = vector.broadcast %86 : vector<1x1xf32> to vector<8x128xf32>
    %c0_23 = arith.constant 0 : index
    %c0_24 = arith.constant 0 : index
    %88 = vector.load %arg8[%c0_23, %c0_24] : memref<8x128xf32, #tpu.memory_space<vmem>>, vector<8x128xf32>
    tpu.vector_store %arg8[%c0_23, %c0_24], %87 {strides = array<i32>} : memref<8x128xf32, #tpu.memory_space<vmem>>, vector<8x128xf32>,
    return
  }
}

</mosaic_0001>

<llo_original>
// kernel: tpu_custom_call.1
$region0: #{tpu_custom_call.1}
  #allocation0 [shape = 'u32[]', space=smem, size = 0x4, offset = 0x4, fixed_abs, tag = 'smem constant byte address 0x4 - core index']
  #allocation1 [shape = 'u32[144,128]{1,0:T(1,128)}', space=vmem, size = 0x12000, scoped, tag = 'internal scratch']
  %s0 = inlined_call_operand.hbm [shape: f32[4,256], index: 0, kind: input, shape index: {}]
  %s1 = inlined_call_operand.hbm [shape: f32[4,256], index: 1, kind: input, shape index: {}]
  %s2 = inlined_call_operand.vmem [shape: f32[1,256], index: 2, kind: input, shape index: {}]
  %s3 = inlined_call_operand.vmem [shape: f32[1,256], index: 3, kind: input, shape index: {}]
  %s4 = inlined_call_operand.hbm [shape: f32[4,256], index: 4, kind: input, shape index: {}]
  %s5 = inlined_call_operand.hbm [shape: f32[256,384], index: 5, kind: input, shape index: {}]
  %s6 = inlined_call_operand.hbm [shape: f32[2,128], index: 6, kind: input, shape index: {}]
  %s7 = inlined_call_operand.vmem [shape: f32[5,128], index: 7, kind: input, shape index: {}]
  %s8 = inlined_call_operand.hbm [shape: f32[8,128], index: 8, kind: output, shape index: {}]
  %s9 = sld [smem:[#allocation0]]
  $region62: #{tpu_custom_call.1} parent=0
    _
  %s11 = ssub.s32 1, %s9
  %s12 = scalar_select 0, %s11, %s9
  $region1: #{tpu_custom_call.1} parent=0
    #allocation2 [shape = 'u8[4096]{0}', space=vmem, size = 0x1000, scoped, tag = 'input window, operand 0, single buffered']
    #allocation3 [shape = 's32[1]{0}', space=sflag, size = 0x4, scoped, tag = 'scoped memory for tpu_custom_call.1']
    #allocation4 [shape = 's32[1]{0}', space=sflag, size = 0x4, scoped, tag = 'scoped memory for tpu_custom_call.1']
    #allocation5 [shape = 'u8[4096]{0}', space=vmem, size = 0x1000, scoped, tag = 'input window, operand 1, single buffered']
    #allocation6 [shape = 's32[1]{0}', space=sflag, size = 0x4, scoped, tag = 'scoped memory for tpu_custom_call.1']
    #allocation7 [shape = 'u8[4096]{0}', space=vmem, size = 0x1000, scoped, tag = 'input window, operand 4, single buffered']
    #allocation8 [shape = 'u8[393216]{0}', space=vmem, size = 0x60000, scoped, tag = 'input window, operand 5, single buffered']
    #allocation9 [shape = 's32[1]{0}', space=sflag, size = 0x4, scoped, tag = 'scoped memory for tpu_custom_call.1']
    #allocation10 [shape = 'u8[1024]{0}', space=vmem, size = 0x400, scoped, tag = 'input window, operand 6, single buffered']
    #allocation11 [shape = 'u8[4096]{0}', space=vmem, size = 0x1000, scoped, tag = 'output window, operand 0, single buffered']
    %13 = vsyncpa [#allocation3], 0
    %14 = vsyncpa [#allocation6], 0
    %15 = vsyncpa [#allocation9], 0
    %16 = vsyncpa [#allocation4], 0
    // Predicated region
    $region2: #{tpu_custom_call.1} parent=1 // pred_check
      _
    $region3: #{tpu_custom_call.1} parent=1 // pred_check_branch
      %18 = sbr.rel (0) target = $region5
    $region4: #{tpu_custom_call.1} parent=1 // pred_region
      %s20 = ssub.s32 128, 128
      %21 = vsyncadd [#allocation3], %s20
      %s23 = sshll.u32 [#allocation2], 4
      %s24 = int_to_ptr.vmem [resolvable:$true] %s23
      %26 = dma.hbm_to_vmem [thread:$0]  %s0, 128, %s24, [#allocation3]
    $region5: #{tpu_custom_call.1} parent=1 // pred_fallthru
      _
    // Predicated region
    $region6: #{tpu_custom_call.1} parent=1 // pred_check
      _
    $region7: #{tpu_custom_call.1} parent=1 // pred_check_branch
      %28 = sbr.rel (0) target = $region9
    $region8: #{tpu_custom_call.1} parent=1 // pred_region
      %s30 = ssub.s32 128, 128
      %31 = vsyncadd [#allocation6], %s30
      %s33 = sshll.u32 [#allocation5], 4
      %s34 = int_to_ptr.vmem [resolvable:$true] %s33
      %36 = dma.hbm_to_vmem [thread:$0]  %s1, 128, %s34, [#allocation6]
    $region9: #{tpu_custom_call.1} parent=1 // pred_fallthru
      _
    // Predicated region
    $region10: #{tpu_custom_call.1} parent=1 // pred_check
      _
    $region11: #{tpu_custom_call.1} parent=1 // pred_check_branch
      %38 = sbr.rel (0) target = $region13
    $region12: #{tpu_custom_call.1} parent=1 // pred_region
      _
    $region13: #{tpu_custom_call.1} parent=1 // pred_fallthru
      _
    // Predicated region
    $region14: #{tpu_custom_call.1} parent=1 // pred_check
      _
    $region15: #{tpu_custom_call.1} parent=1 // pred_check_branch
      %40 = sbr.rel (0) target = $region17
    $region16: #{tpu_custom_call.1} parent=1 // pred_region
      _
    $region17: #{tpu_custom_call.1} parent=1 // pred_fallthru
      _
    // Predicated region
    $region18: #{tpu_custom_call.1} parent=1 // pred_check
      _
    $region19: #{tpu_custom_call.1} parent=1 // pred_check_branch
      %42 = sbr.rel (0) target = $region21
    $region20: #{tpu_custom_call.1} parent=1 // pred_region
      %s44 = ssub.s32 128, 128
      %45 = vsyncadd [#allocation6], %s44
      %s47 = sshll.u32 [#allocation7], 4
      %s48 = int_to_ptr.vmem [resolvable:$true] %s47
      %50 = dma.hbm_to_vmem [thread:$0]  %s4, 128, %s48, [#allocation6]
    $region21: #{tpu_custom_call.1} parent=1 // pred_fallthru
      _
    // Predicated region
    $region22: #{tpu_custom_call.1} parent=1 // pred_check
      _
    $region23: #{tpu_custom_call.1} parent=1 // pred_check_branch
      %52 = sbr.rel (0) target = $region25
    $region24: #{tpu_custom_call.1} parent=1 // pred_region
      %s54 = ssub.s32 12288, 12288
      %55 = vsyncadd [#allocation9], %s54
      %s56 = sshll.u32 [#allocation8], 4
      %s57 = int_to_ptr.vmem [resolvable:$true] %s56
      %62 = dma.hbm_to_vmem [thread:$0]  %s5, 12288, %s57, [#allocation9], 384, 384, 24
    $region25: #{tpu_custom_call.1} parent=1 // pred_fallthru
      _
    // Predicated region
    $region26: #{tpu_custom_call.1} parent=1 // pred_check
      _
    $region27: #{tpu_custom_call.1} parent=1 // pred_check_branch
      %64 = sbr.rel (0) target = $region29
    $region28: #{tpu_custom_call.1} parent=1 // pred_region
      %s66 = ssub.s32 32, 32
      %67 = vsyncadd [#allocation9], %s66
      %s69 = sshll.u32 [#allocation10], 4
      %s70 = int_to_ptr.vmem [resolvable:$true] %s69
      %72 = dma.hbm_to_vmem [thread:$0]  %s6, 32, %s70, [#allocation9]
    $region29: #{tpu_custom_call.1} parent=1 // pred_fallthru
      _
    // Predicated region
    $region30: #{tpu_custom_call.1} parent=1 // pred_check
      _
    $region31: #{tpu_custom_call.1} parent=1 // pred_check_branch
      %74 = sbr.rel (0) target = $region33
    $region32: #{tpu_custom_call.1} parent=1 // pred_region
      _
    $region33: #{tpu_custom_call.1} parent=1 // pred_fallthru
      _
    // Predicated region
    $region34: #{tpu_custom_call.1} parent=1 // pred_check
      _
    $region35: #{tpu_custom_call.1} parent=1 // pred_check_branch
      %76 = sbr.rel (0) target = $region37
    $region36: #{tpu_custom_call.1} parent=1 // pred_region
      %77 = dma.done [#allocation3], 128
    $region37: #{tpu_custom_call.1} parent=1 // pred_fallthru
      _
    // Predicated region
    $region38: #{tpu_custom_call.1} parent=1 // pred_check
      _
    $region39: #{tpu_custom_call.1} parent=1 // pred_check_branch
      %79 = sbr.rel (0) target = $region41
    $region40: #{tpu_custom_call.1} parent=1 // pred_region
      %80 = dma.done [#allocation6], 128
    $region41: #{tpu_custom_call.1} parent=1 // pred_fallthru
      _
    // Predicated region
    $region42: #{tpu_custom_call.1} parent=1 // pred_check
      _
    $region43: #{tpu_custom_call.1} parent=1 // pred_check_branch
      %82 = sbr.rel (0) target = $region45
    $region44: #{tpu_custom_call.1} parent=1 // pred_region
      %83 = dma.done [#allocation6], 128
    $region45: #{tpu_custom_call.1} parent=1 // pred_fallthru
      _
    // Predicated region
    $region46: #{tpu_custom_call.1} parent=1 // pred_check
      _
    $region47: #{tpu_custom_call.1} parent=1 // pred_check_branch
      %85 = sbr.rel (0) target = $region49
    $region48: #{tpu_custom_call.1} parent=1 // pred_region
      %86 = dma.done [#allocation9], 12288
    $region49: #{tpu_custom_call.1} parent=1 // pred_fallthru
      _
    // Predicated region
    $region50: #{tpu_custom_call.1} parent=1 // pred_check
      _
    $region51: #{tpu_custom_call.1} parent=1 // pred_check_branch
      %88 = sbr.rel (0) target = $region53
    $region52: #{tpu_custom_call.1} parent=1 // pred_region
      %89 = dma.done [#allocation9], 32
    $region53: #{tpu_custom_call.1} parent=1 // pred_fallthru
      _
    %v90 = vld [vmem:[#allocation2] sm:$0xff]
    %v91 = vld [vmem:[#allocation5] sm:$0xff]
    %v92 = vld [vmem:[%s2] sm:$0x3]
    %v93 = vld [vmem:[%s3] sm:$0x3]
    %v94 = vld [vmem:[#allocation7] sm:$0xff]
    %v95 = vld [vmem:[#allocation8] sm:$0xff]
    %v96 = vld [vmem:[#allocation8 + $0x8] sm:$0xff]
    %v97 = vld [vmem:[#allocation8 + $0x10] sm:$0xff]
    %v98 = vld [vmem:[#allocation8 + $0x18] sm:$0xff]
    %v99 = vld [vmem:[#allocation8 + $0x20] sm:$0xff]
    %v100 = vld [vmem:[#allocation8 + $0x28] sm:$0xff]
    %v101 = vld [vmem:[#allocation8 + $0x30] sm:$0xff]
    %v102 = vld [vmem:[#allocation8 + $0x38] sm:$0xff]
    %v103 = vld [vmem:[#allocation8 + $0x40] sm:$0xff]
    %v104 = vld [vmem:[#allocation8 + $0x48] sm:$0xff]
    %v105 = vld [vmem:[#allocation8 + $0x50] sm:$0xff]
    %v106 = vld [vmem:[#allocation8 + $0x58] sm:$0xff]
    %v107 = vld [vmem:[#allocation8 + $0x60] sm:$0xff]
    %v108 = vld [vmem:[#allocation8 + $0x68] sm:$0xff]
    %v109 = vld [vmem:[#allocation8 + $0x70] sm:$0xff]
    %v110 = vld [vmem:[#allocation8 + $0x78] sm:$0xff]
    %v111 = vld [vmem:[#allocation8 + $0x80] sm:$0xff]
    %v112 = vld [vmem:[#allocation8 + $0x88] sm:$0xff]
    %v113 = vld [vmem:[#allocation8 + $0x90] sm:$0xff]
    %v114 = vld [vmem:[#allocation8 + $0x98] sm:$0xff]
    %v115 = vld [vmem:[#allocation8 + $0xa0] sm:$0xff]
    %v116 = vld [vmem:[#allocation8 + $0xa8] sm:$0xff]
    %v117 = vld [vmem:[#allocation8 + $0xb0] sm:$0xff]
    %v118 = vld [vmem:[#allocation8 + $0xb8] sm:$0xff]
    %v119 = vld [vmem:[#allocation8 + $0xc0] sm:$0xff]
    %v120 = vld [vmem:[#allocation8 + $0xc8] sm:$0xff]
    %v121 = vld [vmem:[#allocation8 + $0xd0] sm:$0xff]
    %v122 = vld [vmem:[#allocation8 + $0xd8] sm:$0xff]
    %v123 = vld [vmem:[#allocation8 + $0xe0] sm:$0xff]
    %v124 = vld [vmem:[#allocation8 + $0xe8] sm:$0xff]
    %v125 = vld [vmem:[#allocation8 + $0xf0] sm:$0xff]
    %v126 = vld [vmem:[#allocation8 + $0xf8] sm:$0xff]
    %v127 = vld [vmem:[#allocation8 + $0x100] sm:$0xff]
    %v128 = vld [vmem:[#allocation8 + $0x108] sm:$0xff]
    %v129 = vld [vmem:[#allocation8 + $0x110] sm:$0xff]
    %v130 = vld [vmem:[#allocation8 + $0x118] sm:$0xff]
    %v131 = vld [vmem:[#allocation8 + $0x120] sm:$0xff]
    %v132 = vld [vmem:[#allocation8 + $0x128] sm:$0xff]
    %v133 = vld [vmem:[#allocation8 + $0x130] sm:$0xff]
    %v134 = vld [vmem:[#allocation8 + $0x138] sm:$0xff]
    %v135 = vld [vmem:[#allocation8 + $0x140] sm:$0xff]
    %v136 = vld [vmem:[#allocation8 + $0x148] sm:$0xff]
    %v137 = vld [vmem:[#allocation8 + $0x150] sm:$0xff]
    %v138 = vld [vmem:[#allocation8 + $0x158] sm:$0xff]
    %v139 = vld [vmem:[#allocation8 + $0x160] sm:$0xff]
    %v140 = vld [vmem:[#allocation8 + $0x168] sm:$0xff]
    %v141 = vld [vmem:[#allocation8 + $0x170] sm:$0xff]
    %v142 = vld [vmem:[#allocation8 + $0x178] sm:$0xff]
    %v143 = vld [vmem:[#allocation8 + $0x180] sm:$0xff]
    %v144 = vld [vmem:[#allocation8 + $0x188] sm:$0xff]
    %v145 = vld [vmem:[#allocation8 + $0x190] sm:$0xff]
    %v146 = vld [vmem:[#allocation8 + $0x198] sm:$0xff]
    %v147 = vld [vmem:[#allocation8 + $0x1a0] sm:$0xff]
    %v148 = vld [vmem:[#allocation8 + $0x1a8] sm:$0xff]
    %v149 = vld [vmem:[#allocation8 + $0x1b0] sm:$0xff]
    %v150 = vld [vmem:[#allocation8 + $0x1b8] sm:$0xff]
    %v151 = vld [vmem:[#allocation8 + $0x1c0] sm:$0xff]
    %v152 = vld [vmem:[#allocation8 + $0x1c8] sm:$0xff]
    %v153 = vld [vmem:[#allocation8 + $0x1d0] sm:$0xff]
    %v154 = vld [vmem:[#allocation8 + $0x1d8] sm:$0xff]
    %v155 = vld [vmem:[#allocation8 + $0x1e0] sm:$0xff]
    %v156 = vld [vmem:[#allocation8 + $0x1e8] sm:$0xff]
    %v157 = vld [vmem:[#allocation8 + $0x1f0] sm:$0xff]
    %v158 = vld [vmem:[#allocation8 + $0x1f8] sm:$0xff]
    %v159 = vld [vmem:[#allocation8 + $0x200] sm:$0xff]
    %v160 = vld [vmem:[#allocation8 + $0x208] sm:$0xff]
    %v161 = vld [vmem:[#allocation8 + $0x210] sm:$0xff]
    %v162 = vld [vmem:[#allocation8 + $0x218] sm:$0xff]
    %v163 = vld [vmem:[#allocation8 + $0x220] sm:$0xff]
    %v164 = vld [vmem:[#allocation8 + $0x228] sm:$0xff]
    %v165 = vld [vmem:[#allocation8 + $0x230] sm:$0xff]
    %v166 = vld [vmem:[#allocation8 + $0x238] sm:$0xff]
    %v167 = vld [vmem:[#allocation8 + $0x240] sm:$0xff]
    %v168 = vld [vmem:[#allocation8 + $0x248] sm:$0xff]
    %v169 = vld [vmem:[#allocation8 + $0x250] sm:$0xff]
    %v170 = vld [vmem:[#allocation8 + $0x258] sm:$0xff]
    %v171 = vld [vmem:[#allocation8 + $0x260] sm:$0xff]
    %v172 = vld [vmem:[#allocation8 + $0x268] sm:$0xff]
    %v173 = vld [vmem:[#allocation8 + $0x270] sm:$0xff]
    %v174 = vld [vmem:[#allocation8 + $0x278] sm:$0xff]
    %v175 = vld [vmem:[#allocation8 + $0x280] sm:$0xff]
    %v176 = vld [vmem:[#allocation8 + $0x288] sm:$0xff]
    %v177 = vld [vmem:[#allocation8 + $0x290] sm:$0xff]
    %v178 = vld [vmem:[#allocation8 + $0x298] sm:$0xff]
    %v179 = vld [vmem:[#allocation8 + $0x2a0] sm:$0xff]
    %v180 = vld [vmem:[#allocation8 + $0x2a8] sm:$0xff]
    %v181 = vld [vmem:[#allocation8 + $0x2b0] sm:$0xff]
    %v182 = vld [vmem:[#allocation8 + $0x2b8] sm:$0xff]
    %v183 = vld [vmem:[#allocation8 + $0x2c0] sm:$0xff]
    %v184 = vld [vmem:[#allocation8 + $0x2c8] sm:$0xff]
    %v185 = vld [vmem:[#allocation8 + $0x2d0] sm:$0xff]
    %v186 = vld [vmem:[#allocation8 + $0x2d8] sm:$0xff]
    %v187 = vld [vmem:[#allocation8 + $0x2e0] sm:$0xff]
    %v188 = vld [vmem:[#allocation8 + $0x2e8] sm:$0xff]
    %v189 = vld [vmem:[#allocation8 + $0x2f0] sm:$0xff]
    %v190 = vld [vmem:[#allocation8 + $0x2f8] sm:$0xff]
    %v191 = vld [vmem:[#allocation10] sm:$0x3]
    %v192 = vld [vmem:[%s7] sm:$0x1f]
    %v194 = vlaneseq
    %v195 = vshrl.u32 %v194, 7
    %v196 = vsub.s32 0, %v195
    %v197 = vrot.slane %v93, %v196
    %v198 = vlaneseq
    %v199 = vshrl.u32 %v198, 7
    %v200 = vsub.s32 1, %v199
    %v201 = vrot.slane %v93, %v200
    %v202 = vcombine.low %v197, %v201
    %v204 = vmul.f32 %v90, %v202
    %v206 = vlaneseq
    %v207 = vshrl.u32 %v206, 7
    %v208 = vsub.s32 0, %v207
    %v209 = vrot.slane %v92, %v208
    %v210 = vlaneseq
    %v211 = vshrl.u32 %v210, 7
    %v212 = vsub.s32 1, %v211
    %v213 = vrot.slane %v92, %v212
    %v214 = vcombine.low %v209, %v213
    %v216 = vadd.f32 %v204, %v214
    %v217 = vmul.f32 %v91, %v202
    %v218 = vadd.f32 %v217, %v214
    %v219 = vmul.f32 %v216, %v94
    %v221 = vcombine.high %v219, %v219
    %v223 = vand.u32 %v141, 4294901760
    %224 = vmatprep.subr.mxu0 %v223
    %v225 = vand.u32 %v140, 4294901760
    %226 = vmatpush1.msra.mxu0 %v225
    %v227 = vand.u32 %v138, 4294901760
    %228 = vmatprep.subr.mxu0 %v227
    %v229 = vand.u32 %v137, 4294901760
    %230 = vmatpush1.msra.mxu0 %v229
    %v231 = vand.u32 %v135, 4294901760
    %232 = vmatprep.subr.mxu0 %v231
    %v233 = vand.u32 %v134, 4294901760
    %234 = vmatpush1.msra.mxu0 %v233
    %v235 = vand.u32 %v132, 4294901760
    %236 = vmatprep.subr.mxu0 %v235
    %v237 = vand.u32 %v131, 4294901760
    %238 = vmatpush1.msra.mxu0 %v237
    %v239 = vand.u32 %v129, 4294901760
    %240 = vmatprep.subr.mxu0 %v239
    %v241 = vand.u32 %v128, 4294901760
    %242 = vmatpush1.msra.mxu0 %v241
    %v243 = vand.u32 %v126, 4294901760
    %244 = vmatprep.subr.mxu0 %v243
    %v245 = vand.u32 %v125, 4294901760
    %246 = vmatpush1.msra.mxu0 %v245
    %v247 = vand.u32 %v123, 4294901760
    %248 = vmatprep.subr.mxu0 %v247
    %v249 = vand.u32 %v122, 4294901760
    %250 = vmatpush1.msra.mxu0 %v249
    %v251 = vand.u32 %v120, 4294901760
    %252 = vmatprep.subr.mxu0 %v251
    %v253 = vand.u32 %v119, 4294901760
    %254 = vmatpush1.msra.mxu0 %v253
    %v255 = vand.u32 %v117, 4294901760
    %256 = vmatprep.subr.mxu0 %v255
    %v257 = vand.u32 %v116, 4294901760
    %258 = vmatpush1.msra.mxu0 %v257
    %v259 = vand.u32 %v114, 4294901760
    %260 = vmatprep.subr.mxu0 %v259
    %v261 = vand.u32 %v113, 4294901760
    %262 = vmatpush1.msra.mxu0 %v261
    %v263 = vand.u32 %v111, 4294901760
    %264 = vmatprep.subr.mxu0 %v263
    %v265 = vand.u32 %v110, 4294901760
    %266 = vmatpush1.msra.mxu0 %v265
    %v267 = vand.u32 %v108, 4294901760
    %268 = vmatprep.subr.mxu0 %v267
    %v269 = vand.u32 %v107, 4294901760
    %270 = vmatpush1.msra.mxu0 %v269
    %v271 = vand.u32 %v105, 4294901760
    %272 = vmatprep.subr.mxu0 %v271
    %v273 = vand.u32 %v104, 4294901760
    %274 = vmatpush1.msra.mxu0 %v273
    %v275 = vand.u32 %v102, 4294901760
    %276 = vmatprep.subr.mxu0 %v275
    %v277 = vand.u32 %v101, 4294901760
    %278 = vmatpush1.msra.mxu0 %v277
    %v279 = vand.u32 %v99, 4294901760
    %280 = vmatprep.subr.mxu0 %v279
    %v281 = vand.u32 %v98, 4294901760
    %282 = vmatpush1.msra.mxu0 %v281
    %v283 = vand.u32 %v96, 4294901760
    %284 = vmatprep.subr.mxu0 %v283
    %v285 = vand.u32 %v95, 4294901760
    %286 = vmatpush1.msra.mxu0 %v285
    %v287 = vand.u32 %v189, 4294901760
    %288 = vmatprep.subr.mxu0 %v287
    %v289 = vand.u32 %v188, 4294901760
    %290 = vmatpush2.msra.mxu0 %v289
    %v291 = vand.u32 %v186, 4294901760
    %292 = vmatprep.subr.mxu0 %v291
    %v293 = vand.u32 %v185, 4294901760
    %294 = vmatpush2.msra.mxu0 %v293
    %v295 = vand.u32 %v183, 4294901760
    %296 = vmatprep.subr.mxu0 %v295
    %v297 = vand.u32 %v182, 4294901760
    %298 = vmatpush2.msra.mxu0 %v297
    %v299 = vand.u32 %v180, 4294901760
    %300 = vmatprep.subr.mxu0 %v299
    %v301 = vand.u32 %v179, 4294901760
    %302 = vmatpush2.msra.mxu0 %v301
    %v303 = vand.u32 %v177, 4294901760
    %304 = vmatprep.subr.mxu0 %v303
    %v305 = vand.u32 %v176, 4294901760
    %306 = vmatpush2.msra.mxu0 %v305
    %v307 = vand.u32 %v174, 4294901760
    %308 = vmatprep.subr.mxu0 %v307
    %v309 = vand.u32 %v173, 4294901760
    %310 = vmatpush2.msra.mxu0 %v309
    %v311 = vand.u32 %v171, 4294901760
    %312 = vmatprep.subr.mxu0 %v311
    %v313 = vand.u32 %v170, 4294901760
    %314 = vmatpush2.msra.mxu0 %v313
    %v315 = vand.u32 %v168, 4294901760
    %316 = vmatprep.subr.mxu0 %v315
    %v317 = vand.u32 %v167, 4294901760
    %318 = vmatpush2.msra.mxu0 %v317
    %v319 = vand.u32 %v165, 4294901760
    %320 = vmatprep.subr.mxu0 %v319
    %v321 = vand.u32 %v164, 4294901760
    %322 = vmatpush2.msra.mxu0 %v321
    %v323 = vand.u32 %v162, 4294901760
    %324 = vmatprep.subr.mxu0 %v323
    %v325 = vand.u32 %v161, 4294901760
    %326 = vmatpush2.msra.mxu0 %v325
    %v327 = vand.u32 %v159, 4294901760
    %328 = vmatprep.subr.mxu0 %v327
    %v329 = vand.u32 %v158, 4294901760
    %330 = vmatpush2.msra.mxu0 %v329
    %v331 = vand.u32 %v156, 4294901760
    %332 = vmatprep.subr.mxu0 %v331
    %v333 = vand.u32 %v155, 4294901760
    %334 = vmatpush2.msra.mxu0 %v333
    %v335 = vand.u32 %v153, 4294901760
    %336 = vmatprep.subr.mxu0 %v335
    %v337 = vand.u32 %v152, 4294901760
    %338 = vmatpush2.msra.mxu0 %v337
    %v339 = vand.u32 %v150, 4294901760
    %340 = vmatprep.subr.mxu0 %v339
    %v341 = vand.u32 %v149, 4294901760
    %342 = vmatpush2.msra.mxu0 %v341
    %v343 = vand.u32 %v147, 4294901760
    %344 = vmatprep.subr.mxu0 %v343
    %v345 = vand.u32 %v146, 4294901760
    %346 = vmatpush2.msra.mxu0 %v345
    %v347 = vand.u32 %v144, 4294901760
    %348 = vmatprep.subr.mxu0 %v347
    %v349 = vand.u32 %v143, 4294901760
    %350 = vmatpush2.msra.mxu0 %v349
    %v351 = vand.u32 %v221, 4294901760
    %v352 = vsub.f32 %v221, %v351
    %v353 = vand.u32 %v352, 4294901760
    %v354 = vsub.f32 %v352, %v353
    %v355 = vand.u32 %v354, 4294901760
    %356 = vmatprep.mubr.f32.mxu0 %v355
    %v357 = vand.u32 %v219, 4294901760
    %v358 = vsub.f32 %v219, %v357
    %v359 = vand.u32 %v358, 4294901760
    %v360 = vsub.f32 %v358, %v359
    %v361 = vand.u32 %v360, 4294901760
    %362 = vmatmul.mubr.f32.gmra.mxu0 %v361
    %v363 = vpop.f32.mrf.mxu0
    %v364 = vadd.f32 0.0, %v363
    %v365 = vpop.f32.mrf.mxu0
    %v366 = vadd.f32 0.0, %v365
    %367 = vdwg.mxu0
    %v368 = vand.u32 %v141, 4294901760
    %v369 = vsub.f32 %v141, %v368
    %v370 = vand.u32 %v369, 4294901760
    %v371 = vsub.f32 %v369, %v370
    %v372 = vand.u32 %v371, 4294901760
    %373 = vmatprep.subr.mxu0 %v372
    %v374 = vand.u32 %v140, 4294901760
    %v375 = vsub.f32 %v140, %v374
    %v376 = vand.u32 %v375, 4294901760
    %v377 = vsub.f32 %v375, %v376
    %v378 = vand.u32 %v377, 4294901760
    %379 = vmatpush1.msra.mxu0 %v378
    %v380 = vand.u32 %v138, 4294901760
    %v381 = vsub.f32 %v138, %v380
    %v382 = vand.u32 %v381, 4294901760
    %v383 = vsub.f32 %v381, %v382
    %v384 = vand.u32 %v383, 4294901760
    %385 = vmatprep.subr.mxu0 %v384
    %v386 = vand.u32 %v137, 4294901760
    %v387 = vsub.f32 %v137, %v386
    %v388 = vand.u32 %v387, 4294901760
    %v389 = vsub.f32 %v387, %v388
    %v390 = vand.u32 %v389, 4294901760
    %391 = vmatpush1.msra.mxu0 %v390
    %v392 = vand.u32 %v135, 4294901760
    %v393 = vsub.f32 %v135, %v392
    %v394 = vand.u32 %v393, 4294901760
    %v395 = vsub.f32 %v393, %v394
    %v396 = vand.u32 %v395, 4294901760
    %397 = vmatprep.subr.mxu0 %v396
    %v398 = vand.u32 %v134, 4294901760
    %v399 = vsub.f32 %v134, %v398
    %v400 = vand.u32 %v399, 4294901760
    %v401 = vsub.f32 %v399, %v400
    %v402 = vand.u32 %v401, 4294901760
    %403 = vmatpush1.msra.mxu0 %v402
    %v404 = vand.u32 %v132, 4294901760
    %v405 = vsub.f32 %v132, %v404
    %v406 = vand.u32 %v405, 4294901760
    %v407 = vsub.f32 %v405, %v406
    %v408 = vand.u32 %v407, 4294901760
    %409 = vmatprep.subr.mxu0 %v408
    %v410 = vand.u32 %v131, 4294901760
    %v411 = vsub.f32 %v131, %v410
    %v412 = vand.u32 %v411, 4294901760
    %v413 = vsub.f32 %v411, %v412
    %v414 = vand.u32 %v413, 4294901760
    %415 = vmatpush1.msra.mxu0 %v414
    %v416 = vand.u32 %v129, 4294901760
    %v417 = vsub.f32 %v129, %v416
    %v418 = vand.u32 %v417, 4294901760
    %v419 = vsub.f32 %v417, %v418
    %v420 = vand.u32 %v419, 4294901760
    %421 = vmatprep.subr.mxu0 %v420
    %v422 = vand.u32 %v128, 4294901760
    %v423 = vsub.f32 %v128, %v422
    %v424 = vand.u32 %v423, 4294901760
    %v425 = vsub.f32 %v423, %v424
    %v426 = vand.u32 %v425, 4294901760
    %427 = vmatpush1.msra.mxu0 %v426
    %v428 = vand.u32 %v126, 4294901760
    %v429 = vsub.f32 %v126, %v428
    %v430 = vand.u32 %v429, 4294901760
    %v431 = vsub.f32 %v429, %v430
    %v432 = vand.u32 %v431, 4294901760
    %433 = vmatprep.subr.mxu0 %v432
    %v434 = vand.u32 %v125, 4294901760
    %v435 = vsub.f32 %v125, %v434
    %v436 = vand.u32 %v435, 4294901760
    %v437 = vsub.f32 %v435, %v436
    %v438 = vand.u32 %v437, 4294901760
    %439 = vmatpush1.msra.mxu0 %v438
    %v440 = vand.u32 %v123, 4294901760
    %v441 = vsub.f32 %v123, %v440
    %v442 = vand.u32 %v441, 4294901760
    %v443 = vsub.f32 %v441, %v442
    %v444 = vand.u32 %v443, 4294901760
    %445 = vmatprep.subr.mxu0 %v444
    %v446 = vand.u32 %v122, 4294901760
    %v447 = vsub.f32 %v122, %v446
    %v448 = vand.u32 %v447, 4294901760
    %v449 = vsub.f32 %v447, %v448
    %v450 = vand.u32 %v449, 4294901760
    %451 = vmatpush1.msra.mxu0 %v450
    %v452 = vand.u32 %v120, 4294901760
    %v453 = vsub.f32 %v120, %v452
    %v454 = vand.u32 %v453, 4294901760
    %v455 = vsub.f32 %v453, %v454
    %v456 = vand.u32 %v455, 4294901760
    %457 = vmatprep.subr.mxu0 %v456
    %v458 = vand.u32 %v119, 4294901760
    %v459 = vsub.f32 %v119, %v458
    %v460 = vand.u32 %v459, 4294901760
    %v461 = vsub.f32 %v459, %v460
    %v462 = vand.u32 %v461, 4294901760
    %463 = vmatpush1.msra.mxu0 %v462
    %v464 = vand.u32 %v117, 4294901760
    %v465 = vsub.f32 %v117, %v464
    %v466 = vand.u32 %v465, 4294901760
    %v467 = vsub.f32 %v465, %v466
    %v468 = vand.u32 %v467, 4294901760
    %469 = vmatprep.subr.mxu0 %v468
    %v470 = vand.u32 %v116, 4294901760
    %v471 = vsub.f32 %v116, %v470
    %v472 = vand.u32 %v471, 4294901760
    %v473 = vsub.f32 %v471, %v472
    %v474 = vand.u32 %v473, 4294901760
    %475 = vmatpush1.msra.mxu0 %v474
    %v476 = vand.u32 %v114, 4294901760
    %v477 = vsub.f32 %v114, %v476
    %v478 = vand.u32 %v477, 4294901760
    %v479 = vsub.f32 %v477, %v478
    %v480 = vand.u32 %v479, 4294901760
    %481 = vmatprep.subr.mxu0 %v480
    %v482 = vand.u32 %v113, 4294901760
    %v483 = vsub.f32 %v113, %v482
    %v484 = vand.u32 %v483, 4294901760
    %v485 = vsub.f32 %v483, %v484
    %v486 = vand.u32 %v485, 4294901760
    %487 = vmatpush1.msra.mxu0 %v486
    %v488 = vand.u32 %v111, 4294901760
    %v489 = vsub.f32 %v111, %v488
    %v490 = vand.u32 %v489, 4294901760
    %v491 = vsub.f32 %v489, %v490
    %v492 = vand.u32 %v491, 4294901760
    %493 = vmatprep.subr.mxu0 %v492
    %v494 = vand.u32 %v110, 4294901760
    %v495 = vsub.f32 %v110, %v494
    %v496 = vand.u32 %v495, 4294901760
    %v497 = vsub.f32 %v495, %v496
    %v498 = vand.u32 %v497, 4294901760
    %499 = vmatpush1.msra.mxu0 %v498
    %v500 = vand.u32 %v108, 4294901760
    %v501 = vsub.f32 %v108, %v500
    %v502 = vand.u32 %v501, 4294901760
    %v503 = vsub.f32 %v501, %v502
    %v504 = vand.u32 %v503, 4294901760
    %505 = vmatprep.subr.mxu0 %v504
    %v506 = vand.u32 %v107, 4294901760
    %v507 = vsub.f32 %v107, %v506
    %v508 = vand.u32 %v507, 4294901760
    %v509 = vsub.f32 %v507, %v508
    %v510 = vand.u32 %v509, 4294901760
    %511 = vmatpush1.msra.mxu0 %v510
    %v512 = vand.u32 %v105, 4294901760
    %v513 = vsub.f32 %v105, %v512
    %v514 = vand.u32 %v513, 4294901760
    %v515 = vsub.f32 %v513, %v514
    %v516 = vand.u32 %v515, 4294901760
    %517 = vmatprep.subr.mxu0 %v516
    %v518 = vand.u32 %v104, 4294901760
    %v519 = vsub.f32 %v104, %v518
    %v520 = vand.u32 %v519, 4294901760
    %v521 = vsub.f32 %v519, %v520
    %v522 = vand.u32 %v521, 4294901760
    %523 = vmatpush1.msra.mxu0 %v522
    %v524 = vand.u32 %v102, 4294901760
    %v525 = vsub.f32 %v102, %v524
    %v526 = vand.u32 %v525, 4294901760
    %v527 = vsub.f32 %v525, %v526
    %v528 = vand.u32 %v527, 4294901760
    %529 = vmatprep.subr.mxu0 %v528
    %v530 = vand.u32 %v101, 4294901760
    %v531 = vsub.f32 %v101, %v530
    %v532 = vand.u32 %v531, 4294901760
    %v533 = vsub.f32 %v531, %v532
    %v534 = vand.u32 %v533, 4294901760
    %535 = vmatpush1.msra.mxu0 %v534
    %v536 = vand.u32 %v99, 4294901760
    %v537 = vsub.f32 %v99, %v536
    %v538 = vand.u32 %v537, 4294901760
    %v539 = vsub.f32 %v537, %v538
    %v540 = vand.u32 %v539, 4294901760
    %541 = vmatprep.subr.mxu0 %v540
    %v542 = vand.u32 %v98, 4294901760
    %v543 = vsub.f32 %v98, %v542
    %v544 = vand.u32 %v543, 4294901760
    %v545 = vsub.f32 %v543, %v544
    %v546 = vand.u32 %v545, 4294901760
    %547 = vmatpush1.msra.mxu0 %v546
    %v548 = vand.u32 %v96, 4294901760
    %v549 = vsub.f32 %v96, %v548
    %v550 = vand.u32 %v549, 4294901760
    %v551 = vsub.f32 %v549, %v550
    %v552 = vand.u32 %v551, 4294901760
    %553 = vmatprep.subr.mxu0 %v552
    %v554 = vand.u32 %v95, 4294901760
    %v555 = vsub.f32 %v95, %v554
    %v556 = vand.u32 %v555, 4294901760
    %v557 = vsub.f32 %v555, %v556
    %v558 = vand.u32 %v557, 4294901760
    %559 = vmatpush1.msra.mxu0 %v558
    %v560 = vand.u32 %v189, 4294901760
    %v561 = vsub.f32 %v189, %v560
    %v562 = vand.u32 %v561, 4294901760
    %v563 = vsub.f32 %v561, %v562
    %v564 = vand.u32 %v563, 4294901760
    %565 = vmatprep.subr.mxu0 %v564
    %v566 = vand.u32 %v188, 4294901760
    %v567 = vsub.f32 %v188, %v566
    %v568 = vand.u32 %v567, 4294901760
    %v569 = vsub.f32 %v567, %v568
    %v570 = vand.u32 %v569, 4294901760
    %571 = vmatpush2.msra.mxu0 %v570
    %v572 = vand.u32 %v186, 4294901760
    %v573 = vsub.f32 %v186, %v572
    %v574 = vand.u32 %v573, 4294901760
    %v575 = vsub.f32 %v573, %v574
    %v576 = vand.u32 %v575, 4294901760
    %577 = vmatprep.subr.mxu0 %v576
    %v578 = vand.u32 %v185, 4294901760
    %v579 = vsub.f32 %v185, %v578
    %v580 = vand.u32 %v579, 4294901760
    %v581 = vsub.f32 %v579, %v580
    %v582 = vand.u32 %v581, 4294901760
    %583 = vmatpush2.msra.mxu0 %v582
    %v584 = vand.u32 %v183, 4294901760
    %v585 = vsub.f32 %v183, %v584
    %v586 = vand.u32 %v585, 4294901760
    %v587 = vsub.f32 %v585, %v586
    %v588 = vand.u32 %v587, 4294901760
    %589 = vmatprep.subr.mxu0 %v588
    %v590 = vand.u32 %v182, 4294901760
    %v591 = vsub.f32 %v182, %v590
    %v592 = vand.u32 %v591, 4294901760
    %v593 = vsub.f32 %v591, %v592
    %v594 = vand.u32 %v593, 4294901760
    %595 = vmatpush2.msra.mxu0 %v594
    %v596 = vand.u32 %v180, 4294901760
    %v597 = vsub.f32 %v180, %v596
    %v598 = vand.u32 %v597, 4294901760
    %v599 = vsub.f32 %v597, %v598
    %v600 = vand.u32 %v599, 4294901760
    %601 = vmatprep.subr.mxu0 %v600
    %v602 = vand.u32 %v179, 4294901760
    %v603 = vsub.f32 %v179, %v602
    %v604 = vand.u32 %v603, 4294901760
    %v605 = vsub.f32 %v603, %v604
    %v606 = vand.u32 %v605, 4294901760
    %607 = vmatpush2.msra.mxu0 %v606
    %v608 = vand.u32 %v177, 4294901760
    %v609 = vsub.f32 %v177, %v608
    %v610 = vand.u32 %v609, 4294901760
    %v611 = vsub.f32 %v609, %v610
    %v612 = vand.u32 %v611, 4294901760
    %613 = vmatprep.subr.mxu0 %v612
    %v614 = vand.u32 %v176, 4294901760
    %v615 = vsub.f32 %v176, %v614
    %v616 = vand.u32 %v615, 4294901760
    %v617 = vsub.f32 %v615, %v616
    %v618 = vand.u32 %v617, 4294901760
    %619 = vmatpush2.msra.mxu0 %v618
    %v620 = vand.u32 %v174, 4294901760
    %v621 = vsub.f32 %v174, %v620
    %v622 = vand.u32 %v621, 4294901760
    %v623 = vsub.f32 %v621, %v622
    %v624 = vand.u32 %v623, 4294901760
    %625 = vmatprep.subr.mxu0 %v624
    %v626 = vand.u32 %v173, 4294901760
    %v627 = vsub.f32 %v173, %v626
    %v628 = vand.u32 %v627, 4294901760
    %v629 = vsub.f32 %v627, %v628
    %v630 = vand.u32 %v629, 4294901760
    %631 = vmatpush2.msra.mxu0 %v630
    %v632 = vand.u32 %v171, 4294901760
    %v633 = vsub.f32 %v171, %v632
    %v634 = vand.u32 %v633, 4294901760
    %v635 = vsub.f32 %v633, %v634
    %v636 = vand.u32 %v635, 4294901760
    %637 = vmatprep.subr.mxu0 %v636
    %v638 = vand.u32 %v170, 4294901760
    %v639 = vsub.f32 %v170, %v638
    %v640 = vand.u32 %v639, 4294901760
    %v641 = vsub.f32 %v639, %v640
    %v642 = vand.u32 %v641, 4294901760
    %643 = vmatpush2.msra.mxu0 %v642
    %v644 = vand.u32 %v168, 4294901760
    %v645 = vsub.f32 %v168, %v644
    %v646 = vand.u32 %v645, 4294901760
    %v647 = vsub.f32 %v645, %v646
    %v648 = vand.u32 %v647, 4294901760
    %649 = vmatprep.subr.mxu0 %v648
    %v650 = vand.u32 %v167, 4294901760
    %v651 = vsub.f32 %v167, %v650
    %v652 = vand.u32 %v651, 4294901760
    %v653 = vsub.f32 %v651, %v652
    %v654 = vand.u32 %v653, 4294901760
    %655 = vmatpush2.msra.mxu0 %v654
    %v656 = vand.u32 %v165, 4294901760
    %v657 = vsub.f32 %v165, %v656
    %v658 = vand.u32 %v657, 4294901760
    %v659 = vsub.f32 %v657, %v658
    %v660 = vand.u32 %v659, 4294901760
    %661 = vmatprep.subr.mxu0 %v660
    %v662 = vand.u32 %v164, 4294901760
    %v663 = vsub.f32 %v164, %v662
    %v664 = vand.u32 %v663, 4294901760
    %v665 = vsub.f32 %v663, %v664
    %v666 = vand.u32 %v665, 4294901760
    %667 = vmatpush2.msra.mxu0 %v666
    %v668 = vand.u32 %v162, 4294901760
    %v669 = vsub.f32 %v162, %v668
    %v670 = vand.u32 %v669, 4294901760
    %v671 = vsub.f32 %v669, %v670
    %v672 = vand.u32 %v671, 4294901760
    %673 = vmatprep.subr.mxu0 %v672
    %v674 = vand.u32 %v161, 4294901760
    %v675 = vsub.f32 %v161, %v674
    %v676 = vand.u32 %v675, 4294901760
    %v677 = vsub.f32 %v675, %v676
    %v678 = vand.u32 %v677, 4294901760
    %679 = vmatpush2.msra.mxu0 %v678
    %v680 = vand.u32 %v159, 4294901760
    %v681 = vsub.f32 %v159, %v680
    %v682 = vand.u32 %v681, 4294901760
    %v683 = vsub.f32 %v681, %v682
    %v684 = vand.u32 %v683, 4294901760
    %685 = vmatprep.subr.mxu0 %v684
    %v686 = vand.u32 %v158, 4294901760
    %v687 = vsub.f32 %v158, %v686
    %v688 = vand.u32 %v687, 4294901760
    %v689 = vsub.f32 %v687, %v688
    %v690 = vand.u32 %v689, 4294901760
    %691 = vmatpush2.msra.mxu0 %v690
    %v692 = vand.u32 %v156, 4294901760
    %v693 = vsub.f32 %v156, %v692
    %v694 = vand.u32 %v693, 4294901760
    %v695 = vsub.f32 %v693, %v694
    %v696 = vand.u32 %v695, 4294901760
    %697 = vmatprep.subr.mxu0 %v696
    %v698 = vand.u32 %v155, 4294901760
    %v699 = vsub.f32 %v155, %v698
    %v700 = vand.u32 %v699, 4294901760
    %v701 = vsub.f32 %v699, %v700
    %v702 = vand.u32 %v701, 4294901760
    %703 = vmatpush2.msra.mxu0 %v702
    %v704 = vand.u32 %v153, 4294901760
    %v705 = vsub.f32 %v153, %v704
    %v706 = vand.u32 %v705, 4294901760
    %v707 = vsub.f32 %v705, %v706
    %v708 = vand.u32 %v707, 4294901760
    %709 = vmatprep.subr.mxu0 %v708
    %v710 = vand.u32 %v152, 4294901760
    %v711 = vsub.f32 %v152, %v710
    %v712 = vand.u32 %v711, 4294901760
    %v713 = vsub.f32 %v711, %v712
    %v714 = vand.u32 %v713, 4294901760
    %715 = vmatpush2.msra.mxu0 %v714
    %v716 = vand.u32 %v150, 4294901760
    %v717 = vsub.f32 %v150, %v716
    %v718 = vand.u32 %v717, 4294901760
    %v719 = vsub.f32 %v717, %v718
    %v720 = vand.u32 %v719, 4294901760
    %721 = vmatprep.subr.mxu0 %v720
    %v722 = vand.u32 %v149, 4294901760
    %v723 = vsub.f32 %v149, %v722
    %v724 = vand.u32 %v723, 4294901760
    %v725 = vsub.f32 %v723, %v724
    %v726 = vand.u32 %v725, 4294901760
    %727 = vmatpush2.msra.mxu0 %v726
    %v728 = vand.u32 %v147, 4294901760
    %v729 = vsub.f32 %v147, %v728
    %v730 = vand.u32 %v729, 4294901760
    %v731 = vsub.f32 %v729, %v730
    %v732 = vand.u32 %v731, 4294901760
    %733 = vmatprep.subr.mxu0 %v732
    %v734 = vand.u32 %v146, 4294901760
    %v735 = vsub.f32 %v146, %v734
    %v736 = vand.u32 %v735, 4294901760
    %v737 = vsub.f32 %v735, %v736
    %v738 = vand.u32 %v737, 4294901760
    %739 = vmatpush2.msra.mxu0 %v738
    %v740 = vand.u32 %v144, 4294901760
    %v741 = vsub.f32 %v144, %v740
    %v742 = vand.u32 %v741, 4294901760
    %v743 = vsub.f32 %v741, %v742
    %v744 = vand.u32 %v743, 4294901760
    %745 = vmatprep.subr.mxu0 %v744
    %v746 = vand.u32 %v143, 4294901760
    %v747 = vsub.f32 %v143, %v746
    %v748 = vand.u32 %v747, 4294901760
    %v749 = vsub.f32 %v747, %v748
    %v750 = vand.u32 %v749, 4294901760
    %751 = vmatpush2.msra.mxu0 %v750
    %v752 = vand.u32 %v221, 4294901760
    %753 = vmatprep.mubr.f32.mxu0 %v752
    %v754 = vand.u32 %v219, 4294901760
    %755 = vmatmul.mubr.f32.gmra.mxu0 %v754
    %v756 = vpop.f32.mrf.mxu0
    %v757 = vadd.f32 %v364, %v756
    %v758 = vpop.f32.mrf.mxu0
    %v759 = vadd.f32 %v366, %v758
    %760 = vdwg.mxu0
    %v761 = vand.u32 %v141, 4294901760
    %v762 = vsub.f32 %v141, %v761
    %763 = vmatprep.subr.mxu0 %v762
    %v764 = vand.u32 %v140, 4294901760
    %v765 = vsub.f32 %v140, %v764
    %766 = vmatpush1.msra.mxu0 %v765
    %v767 = vand.u32 %v138, 4294901760
    %v768 = vsub.f32 %v138, %v767
    %769 = vmatprep.subr.mxu0 %v768
    %v770 = vand.u32 %v137, 4294901760
    %v771 = vsub.f32 %v137, %v770
    %772 = vmatpush1.msra.mxu0 %v771
    %v773 = vand.u32 %v135, 4294901760
    %v774 = vsub.f32 %v135, %v773
    %775 = vmatprep.subr.mxu0 %v774
    %v776 = vand.u32 %v134, 4294901760
    %v777 = vsub.f32 %v134, %v776
    %778 = vmatpush1.msra.mxu0 %v777
    %v779 = vand.u32 %v132, 4294901760
    %v780 = vsub.f32 %v132, %v779
    %781 = vmatprep.subr.mxu0 %v780
    %v782 = vand.u32 %v131, 4294901760
    %v783 = vsub.f32 %v131, %v782
    %784 = vmatpush1.msra.mxu0 %v783
    %v785 = vand.u32 %v129, 4294901760
    %v786 = vsub.f32 %v129, %v785
    %787 = vmatprep.subr.mxu0 %v786
    %v788 = vand.u32 %v128, 4294901760
    %v789 = vsub.f32 %v128, %v788
    %790 = vmatpush1.msra.mxu0 %v789
    %v791 = vand.u32 %v126, 4294901760
    %v792 = vsub.f32 %v126, %v791
    %793 = vmatprep.subr.mxu0 %v792
    %v794 = vand.u32 %v125, 4294901760
    %v795 = vsub.f32 %v125, %v794
    %796 = vmatpush1.msra.mxu0 %v795
    %v797 = vand.u32 %v123, 4294901760
    %v798 = vsub.f32 %v123, %v797
    %799 = vmatprep.subr.mxu0 %v798
    %v800 = vand.u32 %v122, 4294901760
    %v801 = vsub.f32 %v122, %v800
    %802 = vmatpush1.msra.mxu0 %v801
    %v803 = vand.u32 %v120, 4294901760
    %v804 = vsub.f32 %v120, %v803
    %805 = vmatprep.subr.mxu0 %v804
    %v806 = vand.u32 %v119, 4294901760
    %v807 = vsub.f32 %v119, %v806
    %808 = vmatpush1.msra.mxu0 %v807
    %v809 = vand.u32 %v117, 4294901760
    %v810 = vsub.f32 %v117, %v809
    %811 = vmatprep.subr.mxu0 %v810
    %v812 = vand.u32 %v116, 4294901760
    %v813 = vsub.f32 %v116, %v812
    %814 = vmatpush1.msra.mxu0 %v813
    %v815 = vand.u32 %v114, 4294901760
    %v816 = vsub.f32 %v114, %v815
    %817 = vmatprep.subr.mxu0 %v816
    %v818 = vand.u32 %v113, 4294901760
    %v819 = vsub.f32 %v113, %v818
    %820 = vmatpush1.msra.mxu0 %v819
    %v821 = vand.u32 %v111, 4294901760
    %v822 = vsub.f32 %v111, %v821
    %823 = vmatprep.subr.mxu0 %v822
    %v824 = vand.u32 %v110, 4294901760
    %v825 = vsub.f32 %v110, %v824
    %826 = vmatpush1.msra.mxu0 %v825
    %v827 = vand.u32 %v108, 4294901760
    %v828 = vsub.f32 %v108, %v827
    %829 = vmatprep.subr.mxu0 %v828
    %v830 = vand.u32 %v107, 4294901760
    %v831 = vsub.f32 %v107, %v830
    %832 = vmatpush1.msra.mxu0 %v831
    %v833 = vand.u32 %v105, 4294901760
    %v834 = vsub.f32 %v105, %v833
    %835 = vmatprep.subr.mxu0 %v834
    %v836 = vand.u32 %v104, 4294901760
    %v837 = vsub.f32 %v104, %v836
    %838 = vmatpush1.msra.mxu0 %v837
    %v839 = vand.u32 %v102, 4294901760
    %v840 = vsub.f32 %v102, %v839
    %841 = vmatprep.subr.mxu0 %v840
    %v842 = vand.u32 %v101, 4294901760
    %v843 = vsub.f32 %v101, %v842
    %844 = vmatpush1.msra.mxu0 %v843
    %v845 = vand.u32 %v99, 4294901760
    %v846 = vsub.f32 %v99, %v845
    %847 = vmatprep.subr.mxu0 %v846
    %v848 = vand.u32 %v98, 4294901760
    %v849 = vsub.f32 %v98, %v848
    %850 = vmatpush1.msra.mxu0 %v849
    %v851 = vand.u32 %v96, 4294901760
    %v852 = vsub.f32 %v96, %v851
    %853 = vmatprep.subr.mxu0 %v852
    %v854 = vand.u32 %v95, 4294901760
    %v855 = vsub.f32 %v95, %v854
    %856 = vmatpush1.msra.mxu0 %v855
    %v857 = vand.u32 %v189, 4294901760
    %v858 = vsub.f32 %v189, %v857
    %859 = vmatprep.subr.mxu0 %v858
    %v860 = vand.u32 %v188, 4294901760
    %v861 = vsub.f32 %v188, %v860
    %862 = vmatpush2.msra.mxu0 %v861
    %v863 = vand.u32 %v186, 4294901760
    %v864 = vsub.f32 %v186, %v863
    %865 = vmatprep.subr.mxu0 %v864
    %v866 = vand.u32 %v185, 4294901760
    %v867 = vsub.f32 %v185, %v866
    %868 = vmatpush2.msra.mxu0 %v867
    %v869 = vand.u32 %v183, 4294901760
    %v870 = vsub.f32 %v183, %v869
    %871 = vmatprep.subr.mxu0 %v870
    %v872 = vand.u32 %v182, 4294901760
    %v873 = vsub.f32 %v182, %v872
    %874 = vmatpush2.msra.mxu0 %v873
    %v875 = vand.u32 %v180, 4294901760
    %v876 = vsub.f32 %v180, %v875
    %877 = vmatprep.subr.mxu0 %v876
    %v878 = vand.u32 %v179, 4294901760
    %v879 = vsub.f32 %v179, %v878
    %880 = vmatpush2.msra.mxu0 %v879
    %v881 = vand.u32 %v177, 4294901760
    %v882 = vsub.f32 %v177, %v881
    %883 = vmatprep.subr.mxu0 %v882
    %v884 = vand.u32 %v176, 4294901760
    %v885 = vsub.f32 %v176, %v884
    %886 = vmatpush2.msra.mxu0 %v885
    %v887 = vand.u32 %v174, 4294901760
    %v888 = vsub.f32 %v174, %v887
    %889 = vmatprep.subr.mxu0 %v888
    %v890 = vand.u32 %v173, 4294901760
    %v891 = vsub.f32 %v173, %v890
    %892 = vmatpush2.msra.mxu0 %v891
    %v893 = vand.u32 %v171, 4294901760
    %v894 = vsub.f32 %v171, %v893
    %895 = vmatprep.subr.mxu0 %v894
    %v896 = vand.u32 %v170, 4294901760
    %v897 = vsub.f32 %v170, %v896
    %898 = vmatpush2.msra.mxu0 %v897
    %v899 = vand.u32 %v168, 4294901760
    %v900 = vsub.f32 %v168, %v899
    %901 = vmatprep.subr.mxu0 %v900
    %v902 = vand.u32 %v167, 4294901760
    %v903 = vsub.f32 %v167, %v902
    %904 = vmatpush2.msra.mxu0 %v903
    %v905 = vand.u32 %v165, 4294901760
    %v906 = vsub.f32 %v165, %v905
    %907 = vmatprep.subr.mxu0 %v906
    %v908 = vand.u32 %v164, 4294901760
    %v909 = vsub.f32 %v164, %v908
    %910 = vmatpush2.msra.mxu0 %v909
    %v911 = vand.u32 %v162, 4294901760
    %v912 = vsub.f32 %v162, %v911
    %913 = vmatprep.subr.mxu0 %v912
    %v914 = vand.u32 %v161, 4294901760
    %v915 = vsub.f32 %v161, %v914
    %916 = vmatpush2.msra.mxu0 %v915
    %v917 = vand.u32 %v159, 4294901760
    %v918 = vsub.f32 %v159, %v917
    %919 = vmatprep.subr.mxu0 %v918
    %v920 = vand.u32 %v158, 4294901760
    %v921 = vsub.f32 %v158, %v920
    %922 = vmatpush2.msra.mxu0 %v921
    %v923 = vand.u32 %v156, 4294901760
    %v924 = vsub.f32 %v156, %v923
    %925 = vmatprep.subr.mxu0 %v924
    %v926 = vand.u32 %v155, 4294901760
    %v927 = vsub.f32 %v155, %v926
    %928 = vmatpush2.msra.mxu0 %v927
    %v929 = vand.u32 %v153, 4294901760
    %v930 = vsub.f32 %v153, %v929
    %931 = vmatprep.subr.mxu0 %v930
    %v932 = vand.u32 %v152, 4294901760
    %v933 = vsub.f32 %v152, %v932
    %934 = vmatpush2.msra.mxu0 %v933
    %v935 = vand.u32 %v150, 4294901760
    %v936 = vsub.f32 %v150, %v935
    %937 = vmatprep.subr.mxu0 %v936
    %v938 = vand.u32 %v149, 4294901760
    %v939 = vsub.f32 %v149, %v938
    %940 = vmatpush2.msra.mxu0 %v939
    %v941 = vand.u32 %v147, 4294901760
    %v942 = vsub.f32 %v147, %v941
    %943 = vmatprep.subr.mxu0 %v942
    %v944 = vand.u32 %v146, 4294901760
    %v945 = vsub.f32 %v146, %v944
    %946 = vmatpush2.msra.mxu0 %v945
    %v947 = vand.u32 %v144, 4294901760
    %v948 = vsub.f32 %v144, %v947
    %949 = vmatprep.subr.mxu0 %v948
    %v950 = vand.u32 %v143, 4294901760
    %v951 = vsub.f32 %v143, %v950
    %952 = vmatpush2.msra.mxu0 %v951
    %v953 = vand.u32 %v221, 4294901760
    %v954 = vsub.f32 %v221, %v953
    %955 = vmatprep.mubr.f32.mxu0 %v954
    %v956 = vand.u32 %v219, 4294901760
    %v957 = vsub.f32 %v219, %v956
    %958 = vmatmul.mubr.f32.gmra.mxu0 %v957
    %v959 = vpop.f32.mrf.mxu0
    %v960 = vadd.f32 %v757, %v959
    %v961 = vpop.f32.mrf.mxu0
    %v962 = vadd.f32 %v759, %v961
    %963 = vdwg.mxu0
    %v964 = vand.u32 %v141, 4294901760
    %965 = vmatprep.subr.mxu0 %v964
    %v966 = vand.u32 %v140, 4294901760
    %967 = vmatpush1.msra.mxu0 %v966
    %v968 = vand.u32 %v138, 4294901760
    %969 = vmatprep.subr.mxu0 %v968
    %v970 = vand.u32 %v137, 4294901760
    %971 = vmatpush1.msra.mxu0 %v970
    %v972 = vand.u32 %v135, 4294901760
    %973 = vmatprep.subr.mxu0 %v972
    %v974 = vand.u32 %v134, 4294901760
    %975 = vmatpush1.msra.mxu0 %v974
    %v976 = vand.u32 %v132, 4294901760
    %977 = vmatprep.subr.mxu0 %v976
    %v978 = vand.u32 %v131, 4294901760
    %979 = vmatpush1.msra.mxu0 %v978
    %v980 = vand.u32 %v129, 4294901760
    %981 = vmatprep.subr.mxu0 %v980
    %v982 = vand.u32 %v128, 4294901760
    %983 = vmatpush1.msra.mxu0 %v982
    %v984 = vand.u32 %v126, 4294901760
    %985 = vmatprep.subr.mxu0 %v984
    %v986 = vand.u32 %v125, 4294901760
    %987 = vmatpush1.msra.mxu0 %v986
    %v988 = vand.u32 %v123, 4294901760
    %989 = vmatprep.subr.mxu0 %v988
    %v990 = vand.u32 %v122, 4294901760
    %991 = vmatpush1.msra.mxu0 %v990
    %v992 = vand.u32 %v120, 4294901760
    %993 = vmatprep.subr.mxu0 %v992
    %v994 = vand.u32 %v119, 4294901760
    %995 = vmatpush1.msra.mxu0 %v994
    %v996 = vand.u32 %v117, 4294901760
    %997 = vmatprep.subr.mxu0 %v996
    %v998 = vand.u32 %v116, 4294901760
    %999 = vmatpush1.msra.mxu0 %v998
    %v1000 = vand.u32 %v114, 4294901760
    %1001 = vmatprep.subr.mxu0 %v1000
    %v1002 = vand.u32 %v113, 4294901760
    %1003 = vmatpush1.msra.mxu0 %v1002
    %v1004 = vand.u32 %v111, 4294901760
    %1005 = vmatprep.subr.mxu0 %v1004
    %v1006 = vand.u32 %v110, 4294901760
    %1007 = vmatpush1.msra.mxu0 %v1006
    %v1008 = vand.u32 %v108, 4294901760
    %1009 = vmatprep.subr.mxu0 %v1008
    %v1010 = vand.u32 %v107, 4294901760
    %1011 = vmatpush1.msra.mxu0 %v1010
    %v1012 = vand.u32 %v105, 4294901760
    %1013 = vmatprep.subr.mxu0 %v1012
    %v1014 = vand.u32 %v104, 4294901760
    %1015 = vmatpush1.msra.mxu0 %v1014
    %v1016 = vand.u32 %v102, 4294901760
    %1017 = vmatprep.subr.mxu0 %v1016
    %v1018 = vand.u32 %v101, 4294901760
    %1019 = vmatpush1.msra.mxu0 %v1018
    %v1020 = vand.u32 %v99, 4294901760
    %1021 = vmatprep.subr.mxu0 %v1020
    %v1022 = vand.u32 %v98, 4294901760
    %1023 = vmatpush1.msra.mxu0 %v1022
    %v1024 = vand.u32 %v96, 4294901760
    %1025 = vmatprep.subr.mxu0 %v1024
    %v1026 = vand.u32 %v95, 4294901760
    %1027 = vmatpush1.msra.mxu0 %v1026
    %v1028 = vand.u32 %v189, 4294901760
    %1029 = vmatprep.subr.mxu0 %v1028
    %v1030 = vand.u32 %v188, 4294901760
    %1031 = vmatpush2.msra.mxu0 %v1030
    %v1032 = vand.u32 %v186, 4294901760
    %1033 = vmatprep.subr.mxu0 %v1032
    %v1034 = vand.u32 %v185, 4294901760
    %1035 = vmatpush2.msra.mxu0 %v1034
    %v1036 = vand.u32 %v183, 4294901760
    %1037 = vmatprep.subr.mxu0 %v1036
    %v1038 = vand.u32 %v182, 4294901760
    %1039 = vmatpush2.msra.mxu0 %v1038
    %v1040 = vand.u32 %v180, 4294901760
    %1041 = vmatprep.subr.mxu0 %v1040
    %v1042 = vand.u32 %v179, 4294901760
    %1043 = vmatpush2.msra.mxu0 %v1042
    %v1044 = vand.u32 %v177, 4294901760
    %1045 = vmatprep.subr.mxu0 %v1044
    %v1046 = vand.u32 %v176, 4294901760
    %1047 = vmatpush2.msra.mxu0 %v1046
    %v1048 = vand.u32 %v174, 4294901760
    %1049 = vmatprep.subr.mxu0 %v1048
    %v1050 = vand.u32 %v173, 4294901760
    %1051 = vmatpush2.msra.mxu0 %v1050
    %v1052 = vand.u32 %v171, 4294901760
    %1053 = vmatprep.subr.mxu0 %v1052
    %v1054 = vand.u32 %v170, 4294901760
    %1055 = vmatpush2.msra.mxu0 %v1054
    %v1056 = vand.u32 %v168, 4294901760
    %1057 = vmatprep.subr.mxu0 %v1056
    %v1058 = vand.u32 %v167, 4294901760
    %1059 = vmatpush2.msra.mxu0 %v1058
    %v1060 = vand.u32 %v165, 4294901760
    %1061 = vmatprep.subr.mxu0 %v1060
    %v1062 = vand.u32 %v164, 4294901760
    %1063 = vmatpush2.msra.mxu0 %v1062
    %v1064 = vand.u32 %v162, 4294901760
    %1065 = vmatprep.subr.mxu0 %v1064
    %v1066 = vand.u32 %v161, 4294901760
    %1067 = vmatpush2.msra.mxu0 %v1066
    %v1068 = vand.u32 %v159, 4294901760
    %1069 = vmatprep.subr.mxu0 %v1068
    %v1070 = vand.u32 %v158, 4294901760
    %1071 = vmatpush2.msra.mxu0 %v1070
    %v1072 = vand.u32 %v156, 4294901760
    %1073 = vmatprep.subr.mxu0 %v1072
    %v1074 = vand.u32 %v155, 4294901760
    %1075 = vmatpush2.msra.mxu0 %v1074
    %v1076 = vand.u32 %v153, 4294901760
    %1077 = vmatprep.subr.mxu0 %v1076
    %v1078 = vand.u32 %v152, 4294901760
    %1079 = vmatpush2.msra.mxu0 %v1078
    %v1080 = vand.u32 %v150, 4294901760
    %1081 = vmatprep.subr.mxu0 %v1080
    %v1082 = vand.u32 %v149, 4294901760
    %1083 = vmatpush2.msra.mxu0 %v1082
    %v1084 = vand.u32 %v147, 4294901760
    %1085 = vmatprep.subr.mxu0 %v1084
    %v1086 = vand.u32 %v146, 4294901760
    %1087 = vmatpush2.msra.mxu0 %v1086
    %v1088 = vand.u32 %v144, 4294901760
    %1089 = vmatprep.subr.mxu0 %v1088
    %v1090 = vand.u32 %v143, 4294901760
    %1091 = vmatpush2.msra.mxu0 %v1090
    %v1092 = vand.u32 %v221, 4294901760
    %v1093 = vsub.f32 %v221, %v1092
    %v1094 = vand.u32 %v1093, 4294901760
    %1095 = vmatprep.mubr.f32.mxu0 %v1094
    %v1096 = vand.u32 %v219, 4294901760
    %v1097 = vsub.f32 %v219, %v1096
    %v1098 = vand.u32 %v1097, 4294901760
    %1099 = vmatmul.mubr.f32.gmra.mxu0 %v1098
    %v1100 = vpop.f32.mrf.mxu0
    %v1101 = vadd.f32 %v960, %v1100
    %v1102 = vpop.f32.mrf.mxu0
    %v1103 = vadd.f32 %v962, %v1102
    %1104 = vdwg.mxu0
    %v1105 = vand.u32 %v141, 4294901760
    %v1106 = vsub.f32 %v141, %v1105
    %v1107 = vand.u32 %v1106, 4294901760
    %1108 = vmatprep.subr.mxu0 %v1107
    %v1109 = vand.u32 %v140, 4294901760
    %v1110 = vsub.f32 %v140, %v1109
    %v1111 = vand.u32 %v1110, 4294901760
    %1112 = vmatpush1.msra.mxu0 %v1111
    %v1113 = vand.u32 %v138, 4294901760
    %v1114 = vsub.f32 %v138, %v1113
    %v1115 = vand.u32 %v1114, 4294901760
    %1116 = vmatprep.subr.mxu0 %v1115
    %v1117 = vand.u32 %v137, 4294901760
    %v1118 = vsub.f32 %v137, %v1117
    %v1119 = vand.u32 %v1118, 4294901760
    %1120 = vmatpush1.msra.mxu0 %v1119
    %v1121 = vand.u32 %v135, 4294901760
    %v1122 = vsub.f32 %v135, %v1121
    %v1123 = vand.u32 %v1122, 4294901760
    %1124 = vmatprep.subr.mxu0 %v1123
    %v1125 = vand.u32 %v134, 4294901760
    %v1126 = vsub.f32 %v134, %v1125
    %v1127 = vand.u32 %v1126, 4294901760
    %1128 = vmatpush1.msra.mxu0 %v1127
    %v1129 = vand.u32 %v132, 4294901760
    %v1130 = vsub.f32 %v132, %v1129
    %v1131 = vand.u32 %v1130, 4294901760
    %1132 = vmatprep.subr.mxu0 %v1131
    %v1133 = vand.u32 %v131, 4294901760
    %v1134 = vsub.f32 %v131, %v1133
    %v1135 = vand.u32 %v1134, 4294901760
    %1136 = vmatpush1.msra.mxu0 %v1135
    %v1137 = vand.u32 %v129, 4294901760
    %v1138 = vsub.f32 %v129, %v1137
    %v1139 = vand.u32 %v1138, 4294901760
    %1140 = vmatprep.subr.mxu0 %v1139
    %v1141 = vand.u32 %v128, 4294901760
    %v1142 = vsub.f32 %v128, %v1141
    %v1143 = vand.u32 %v1142, 4294901760
    %1144 = vmatpush1.msra.mxu0 %v1143
    %v1145 = vand.u32 %v126, 4294901760
    %v1146 = vsub.f32 %v126, %v1145
    %v1147 = vand.u32 %v1146, 4294901760
    %1148 = vmatprep.subr.mxu0 %v1147
    %v1149 = vand.u32 %v125, 4294901760
    %v1150 = vsub.f32 %v125, %v1149
    %v1151 = vand.u32 %v1150, 4294901760
    %1152 = vmatpush1.msra.mxu0 %v1151
    %v1153 = vand.u32 %v123, 4294901760
    %v1154 = vsub.f32 %v123, %v1153
    %v1155 = vand.u32 %v1154, 4294901760
    %1156 = vmatprep.subr.mxu0 %v1155
    %v1157 = vand.u32 %v122, 4294901760
    %v1158 = vsub.f32 %v122, %v1157
    %v1159 = vand.u32 %v1158, 4294901760
    %1160 = vmatpush1.msra.mxu0 %v1159
    %v1161 = vand.u32 %v120, 4294901760
    %v1162 = vsub.f32 %v120, %v1161
    %v1163 = vand.u32 %v1162, 4294901760
    %1164 = vmatprep.subr.mxu0 %v1163
    %v1165 = vand.u32 %v119, 4294901760
    %v1166 = vsub.f32 %v119, %v1165
    %v1167 = vand.u32 %v1166, 4294901760
    %1168 = vmatpush1.msra.mxu0 %v1167
    %v1169 = vand.u32 %v117, 4294901760
    %v1170 = vsub.f32 %v117, %v1169
    %v1171 = vand.u32 %v1170, 4294901760
    %1172 = vmatprep.subr.mxu0 %v1171
    %v1173 = vand.u32 %v116, 4294901760
    %v1174 = vsub.f32 %v116, %v1173
    %v1175 = vand.u32 %v1174, 4294901760
    %1176 = vmatpush1.msra.mxu0 %v1175
    %v1177 = vand.u32 %v114, 4294901760
    %v1178 = vsub.f32 %v114, %v1177
    %v1179 = vand.u32 %v1178, 4294901760
    %1180 = vmatprep.subr.mxu0 %v1179
    %v1181 = vand.u32 %v113, 4294901760
    %v1182 = vsub.f32 %v113, %v1181
    %v1183 = vand.u32 %v1182, 4294901760
    %1184 = vmatpush1.msra.mxu0 %v1183
    %v1185 = vand.u32 %v111, 4294901760
    %v1186 = vsub.f32 %v111, %v1185
    %v1187 = vand.u32 %v1186, 4294901760
    %1188 = vmatprep.subr.mxu0 %v1187
    %v1189 = vand.u32 %v110, 4294901760
    %v1190 = vsub.f32 %v110, %v1189
    %v1191 = vand.u32 %v1190, 4294901760
    %1192 = vmatpush1.msra.mxu0 %v1191
    %v1193 = vand.u32 %v108, 4294901760
    %v1194 = vsub.f32 %v108, %v1193
    %v1195 = vand.u32 %v1194, 4294901760
    %1196 = vmatprep.subr.mxu0 %v1195
    %v1197 = vand.u32 %v107, 4294901760
    %v1198 = vsub.f32 %v107, %v1197
    %v1199 = vand.u32 %v1198, 4294901760
    %1200 = vmatpush1.msra.mxu0 %v1199
    %v1201 = vand.u32 %v105, 4294901760
    %v1202 = vsub.f32 %v105, %v1201
    %v1203 = vand.u32 %v1202, 4294901760
    %1204 = vmatprep.subr.mxu0 %v1203
    %v1205 = vand.u32 %v104, 4294901760
    %v1206 = vsub.f32 %v104, %v1205
    %v1207 = vand.u32 %v1206, 4294901760
    %1208 = vmatpush1.msra.mxu0 %v1207
    %v1209 = vand.u32 %v102, 4294901760
    %v1210 = vsub.f32 %v102, %v1209
    %v1211 = vand.u32 %v1210, 4294901760
    %1212 = vmatprep.subr.mxu0 %v1211
    %v1213 = vand.u32 %v101, 4294901760
    %v1214 = vsub.f32 %v101, %v1213
    %v1215 = vand.u32 %v1214, 4294901760
    %1216 = vmatpush1.msra.mxu0 %v1215
    %v1217 = vand.u32 %v99, 4294901760
    %v1218 = vsub.f32 %v99, %v1217
    %v1219 = vand.u32 %v1218, 4294901760
    %1220 = vmatprep.subr.mxu0 %v1219
    %v1221 = vand.u32 %v98, 4294901760
    %v1222 = vsub.f32 %v98, %v1221
    %v1223 = vand.u32 %v1222, 4294901760
    %1224 = vmatpush1.msra.mxu0 %v1223
    %v1225 = vand.u32 %v96, 4294901760
    %v1226 = vsub.f32 %v96, %v1225
    %v1227 = vand.u32 %v1226, 4294901760
    %1228 = vmatprep.subr.mxu0 %v1227
    %v1229 = vand.u32 %v95, 4294901760
    %v1230 = vsub.f32 %v95, %v1229
    %v1231 = vand.u32 %v1230, 4294901760
    %1232 = vmatpush1.msra.mxu0 %v1231
    %v1233 = vand.u32 %v189, 4294901760
    %v1234 = vsub.f32 %v189, %v1233
    %v1235 = vand.u32 %v1234, 4294901760
    %1236 = vmatprep.subr.mxu0 %v1235
    %v1237 = vand.u32 %v188, 4294901760
    %v1238 = vsub.f32 %v188, %v1237
    %v1239 = vand.u32 %v1238, 4294901760
    %1240 = vmatpush2.msra.mxu0 %v1239
    %v1241 = vand.u32 %v186, 4294901760
    %v1242 = vsub.f32 %v186, %v1241
    %v1243 = vand.u32 %v1242, 4294901760
    %1244 = vmatprep.subr.mxu0 %v1243
    %v1245 = vand.u32 %v185, 4294901760
    %v1246 = vsub.f32 %v185, %v1245
    %v1247 = vand.u32 %v1246, 4294901760
    %1248 = vmatpush2.msra.mxu0 %v1247
    %v1249 = vand.u32 %v183, 4294901760
    %v1250 = vsub.f32 %v183, %v1249
    %v1251 = vand.u32 %v1250, 4294901760
    %1252 = vmatprep.subr.mxu0 %v1251
    %v1253 = vand.u32 %v182, 4294901760
    %v1254 = vsub.f32 %v182, %v1253
    %v1255 = vand.u32 %v1254, 4294901760
    %1256 = vmatpush2.msra.mxu0 %v1255
    %v1257 = vand.u32 %v180, 4294901760
    %v1258 = vsub.f32 %v180, %v1257
    %v1259 = vand.u32 %v1258, 4294901760
    %1260 = vmatprep.subr.mxu0 %v1259
    %v1261 = vand.u32 %v179, 4294901760
    %v1262 = vsub.f32 %v179, %v1261
    %v1263 = vand.u32 %v1262, 4294901760
    %1264 = vmatpush2.msra.mxu0 %v1263
    %v1265 = vand.u32 %v177, 4294901760
    %v1266 = vsub.f32 %v177, %v1265
    %v1267 = vand.u32 %v1266, 4294901760
    %1268 = vmatprep.subr.mxu0 %v1267
    %v1269 = vand.u32 %v176, 4294901760
    %v1270 = vsub.f32 %v176, %v1269
    %v1271 = vand.u32 %v1270, 4294901760
    %1272 = vmatpush2.msra.mxu0 %v1271
    %v1273 = vand.u32 %v174, 4294901760
    %v1274 = vsub.f32 %v174, %v1273
    %v1275 = vand.u32 %v1274, 4294901760
    %1276 = vmatprep.subr.mxu0 %v1275
    %v1277 = vand.u32 %v173, 4294901760
    %v1278 = vsub.f32 %v173, %v1277
    %v1279 = vand.u32 %v1278, 4294901760
    %1280 = vmatpush2.msra.mxu0 %v1279
    %v1281 = vand.u32 %v171, 4294901760
    %v1282 = vsub.f32 %v171, %v1281
    %v1283 = vand.u32 %v1282, 4294901760
    %1284 = vmatprep.subr.mxu0 %v1283
    %v1285 = vand.u32 %v170, 4294901760
    %v1286 = vsub.f32 %v170, %v1285
    %v1287 = vand.u32 %v1286, 4294901760
    %1288 = vmatpush2.msra.mxu0 %v1287
    %v1289 = vand.u32 %v168, 4294901760
    %v1290 = vsub.f32 %v168, %v1289
    %v1291 = vand.u32 %v1290, 4294901760
    %1292 = vmatprep.subr.mxu0 %v1291
    %v1293 = vand.u32 %v167, 4294901760
    %v1294 = vsub.f32 %v167, %v1293
    %v1295 = vand.u32 %v1294, 4294901760
    %1296 = vmatpush2.msra.mxu0 %v1295
    %v1297 = vand.u32 %v165, 4294901760
    %v1298 = vsub.f32 %v165, %v1297
    %v1299 = vand.u32 %v1298, 4294901760
    %1300 = vmatprep.subr.mxu0 %v1299
    %v1301 = vand.u32 %v164, 4294901760
    %v1302 = vsub.f32 %v164, %v1301
    %v1303 = vand.u32 %v1302, 4294901760
    %1304 = vmatpush2.msra.mxu0 %v1303
    %v1305 = vand.u32 %v162, 4294901760
    %v1306 = vsub.f32 %v162, %v1305
    %v1307 = vand.u32 %v1306, 4294901760
    %1308 = vmatprep.subr.mxu0 %v1307
    %v1309 = vand.u32 %v161, 4294901760
    %v1310 = vsub.f32 %v161, %v1309
    %v1311 = vand.u32 %v1310, 4294901760
    %1312 = vmatpush2.msra.mxu0 %v1311
    %v1313 = vand.u32 %v159, 4294901760
    %v1314 = vsub.f32 %v159, %v1313
    %v1315 = vand.u32 %v1314, 4294901760
    %1316 = vmatprep.subr.mxu0 %v1315
    %v1317 = vand.u32 %v158, 4294901760
    %v1318 = vsub.f32 %v158, %v1317
    %v1319 = vand.u32 %v1318, 4294901760
    %1320 = vmatpush2.msra.mxu0 %v1319
    %v1321 = vand.u32 %v156, 4294901760
    %v1322 = vsub.f32 %v156, %v1321
    %v1323 = vand.u32 %v1322, 4294901760
    %1324 = vmatprep.subr.mxu0 %v1323
    %v1325 = vand.u32 %v155, 4294901760
    %v1326 = vsub.f32 %v155, %v1325
    %v1327 = vand.u32 %v1326, 4294901760
    %1328 = vmatpush2.msra.mxu0 %v1327
    %v1329 = vand.u32 %v153, 4294901760
    %v1330 = vsub.f32 %v153, %v1329
    %v1331 = vand.u32 %v1330, 4294901760
    %1332 = vmatprep.subr.mxu0 %v1331
    %v1333 = vand.u32 %v152, 4294901760
    %v1334 = vsub.f32 %v152, %v1333
    %v1335 = vand.u32 %v1334, 4294901760
    %1336 = vmatpush2.msra.mxu0 %v1335
    %v1337 = vand.u32 %v150, 4294901760
    %v1338 = vsub.f32 %v150, %v1337
    %v1339 = vand.u32 %v1338, 4294901760
    %1340 = vmatprep.subr.mxu0 %v1339
    %v1341 = vand.u32 %v149, 4294901760
    %v1342 = vsub.f32 %v149, %v1341
    %v1343 = vand.u32 %v1342, 4294901760
    %1344 = vmatpush2.msra.mxu0 %v1343
    %v1345 = vand.u32 %v147, 4294901760
    %v1346 = vsub.f32 %v147, %v1345
    %v1347 = vand.u32 %v1346, 4294901760
    %1348 = vmatprep.subr.mxu0 %v1347
    %v1349 = vand.u32 %v146, 4294901760
    %v1350 = vsub.f32 %v146, %v1349
    %v1351 = vand.u32 %v1350, 4294901760
    %1352 = vmatpush2.msra.mxu0 %v1351
    %v1353 = vand.u32 %v144, 4294901760
    %v1354 = vsub.f32 %v144, %v1353
    %v1355 = vand.u32 %v1354, 4294901760
    %1356 = vmatprep.subr.mxu0 %v1355
    %v1357 = vand.u32 %v143, 4294901760
    %v1358 = vsub.f32 %v143, %v1357
    %v1359 = vand.u32 %v1358, 4294901760
    %1360 = vmatpush2.msra.mxu0 %v1359
    %v1361 = vand.u32 %v221, 4294901760
    %1362 = vmatprep.mubr.f32.mxu0 %v1361
    %v1363 = vand.u32 %v219, 4294901760
    %1364 = vmatmul.mubr.f32.gmra.mxu0 %v1363
    %v1365 = vpop.f32.mrf.mxu0
    %v1366 = vadd.f32 %v1101, %v1365
    %v1367 = vpop.f32.mrf.mxu0
    %v1368 = vadd.f32 %v1103, %v1367
    %1369 = vdwg.mxu0
    %v1370 = vand.u32 %v141, 4294901760
    %1371 = vmatprep.subr.mxu0 %v1370
    %v1372 = vand.u32 %v140, 4294901760
    %1373 = vmatpush1.msra.mxu0 %v1372
    %v1374 = vand.u32 %v138, 4294901760
    %1375 = vmatprep.subr.mxu0 %v1374
    %v1376 = vand.u32 %v137, 4294901760
    %1377 = vmatpush1.msra.mxu0 %v1376
    %v1378 = vand.u32 %v135, 4294901760
    %1379 = vmatprep.subr.mxu0 %v1378
    %v1380 = vand.u32 %v134, 4294901760
    %1381 = vmatpush1.msra.mxu0 %v1380
    %v1382 = vand.u32 %v132, 4294901760
    %1383 = vmatprep.subr.mxu0 %v1382
    %v1384 = vand.u32 %v131, 4294901760
    %1385 = vmatpush1.msra.mxu0 %v1384
    %v1386 = vand.u32 %v129, 4294901760
    %1387 = vmatprep.subr.mxu0 %v1386
    %v1388 = vand.u32 %v128, 4294901760
    %1389 = vmatpush1.msra.mxu0 %v1388
    %v1390 = vand.u32 %v126, 4294901760
    %1391 = vmatprep.subr.mxu0 %v1390
    %v1392 = vand.u32 %v125, 4294901760
    %1393 = vmatpush1.msra.mxu0 %v1392
    %v1394 = vand.u32 %v123, 4294901760
    %1395 = vmatprep.subr.mxu0 %v1394
    %v1396 = vand.u32 %v122, 4294901760
    %1397 = vmatpush1.msra.mxu0 %v1396
    %v1398 = vand.u32 %v120, 4294901760
    %1399 = vmatprep.subr.mxu0 %v1398
    %v1400 = vand.u32 %v119, 4294901760
    %1401 = vmatpush1.msra.mxu0 %v1400
    %v1402 = vand.u32 %v117, 4294901760
    %1403 = vmatprep.subr.mxu0 %v1402
    %v1404 = vand.u32 %v116, 4294901760
    %1405 = vmatpush1.msra.mxu0 %v1404
    %v1406 = vand.u32 %v114, 4294901760
    %1407 = vmatprep.subr.mxu0 %v1406
    %v1408 = vand.u32 %v113, 4294901760
    %1409 = vmatpush1.msra.mxu0 %v1408
    %v1410 = vand.u32 %v111, 4294901760
    %1411 = vmatprep.subr.mxu0 %v1410
    %v1412 = vand.u32 %v110, 4294901760
    %1413 = vmatpush1.msra.mxu0 %v1412
    %v1414 = vand.u32 %v108, 4294901760
    %1415 = vmatprep.subr.mxu0 %v1414
    %v1416 = vand.u32 %v107, 4294901760
    %1417 = vmatpush1.msra.mxu0 %v1416
    %v1418 = vand.u32 %v105, 4294901760
    %1419 = vmatprep.subr.mxu0 %v1418
    %v1420 = vand.u32 %v104, 4294901760
    %1421 = vmatpush1.msra.mxu0 %v1420
    %v1422 = vand.u32 %v102, 4294901760
    %1423 = vmatprep.subr.mxu0 %v1422
    %v1424 = vand.u32 %v101, 4294901760
    %1425 = vmatpush1.msra.mxu0 %v1424
    %v1426 = vand.u32 %v99, 4294901760
    %1427 = vmatprep.subr.mxu0 %v1426
    %v1428 = vand.u32 %v98, 4294901760
    %1429 = vmatpush1.msra.mxu0 %v1428
    %v1430 = vand.u32 %v96, 4294901760
    %1431 = vmatprep.subr.mxu0 %v1430
    %v1432 = vand.u32 %v95, 4294901760
    %1433 = vmatpush1.msra.mxu0 %v1432
    %v1434 = vand.u32 %v189, 4294901760
    %1435 = vmatprep.subr.mxu0 %v1434
    %v1436 = vand.u32 %v188, 4294901760
    %1437 = vmatpush2.msra.mxu0 %v1436
    %v1438 = vand.u32 %v186, 4294901760
    %1439 = vmatprep.subr.mxu0 %v1438
    %v1440 = vand.u32 %v185, 4294901760
    %1441 = vmatpush2.msra.mxu0 %v1440
    %v1442 = vand.u32 %v183, 4294901760
    %1443 = vmatprep.subr.mxu0 %v1442
    %v1444 = vand.u32 %v182, 4294901760
    %1445 = vmatpush2.msra.mxu0 %v1444
    %v1446 = vand.u32 %v180, 4294901760
    %1447 = vmatprep.subr.mxu0 %v1446
    %v1448 = vand.u32 %v179, 4294901760
    %1449 = vmatpush2.msra.mxu0 %v1448
    %v1450 = vand.u32 %v177, 4294901760
    %1451 = vmatprep.subr.mxu0 %v1450
    %v1452 = vand.u32 %v176, 4294901760
    %1453 = vmatpush2.msra.mxu0 %v1452
    %v1454 = vand.u32 %v174, 4294901760
    %1455 = vmatprep.subr.mxu0 %v1454
    %v1456 = vand.u32 %v173, 4294901760
    %1457 = vmatpush2.msra.mxu0 %v1456
    %v1458 = vand.u32 %v171, 4294901760
    %1459 = vmatprep.subr.mxu0 %v1458
    %v1460 = vand.u32 %v170, 4294901760
    %1461 = vmatpush2.msra.mxu0 %v1460
    %v1462 = vand.u32 %v168, 4294901760
    %1463 = vmatprep.subr.mxu0 %v1462
    %v1464 = vand.u32 %v167, 4294901760
    %1465 = vmatpush2.msra.mxu0 %v1464
    %v1466 = vand.u32 %v165, 4294901760
    %1467 = vmatprep.subr.mxu0 %v1466
    %v1468 = vand.u32 %v164, 4294901760
    %1469 = vmatpush2.msra.mxu0 %v1468
    %v1470 = vand.u32 %v162, 4294901760
    %1471 = vmatprep.subr.mxu0 %v1470
    %v1472 = vand.u32 %v161, 4294901760
    %1473 = vmatpush2.msra.mxu0 %v1472
    %v1474 = vand.u32 %v159, 4294901760
    %1475 = vmatprep.subr.mxu0 %v1474
    %v1476 = vand.u32 %v158, 4294901760
    %1477 = vmatpush2.msra.mxu0 %v1476
    %v1478 = vand.u32 %v156, 4294901760
    %1479 = vmatprep.subr.mxu0 %v1478
    %v1480 = vand.u32 %v155, 4294901760
    %1481 = vmatpush2.msra.mxu0 %v1480
    %v1482 = vand.u32 %v153, 4294901760
    %1483 = vmatprep.subr.mxu0 %v1482
    %v1484 = vand.u32 %v152, 4294901760
    %1485 = vmatpush2.msra.mxu0 %v1484
    %v1486 = vand.u32 %v150, 4294901760
    %1487 = vmatprep.subr.mxu0 %v1486
    %v1488 = vand.u32 %v149, 4294901760
    %1489 = vmatpush2.msra.mxu0 %v1488
    %v1490 = vand.u32 %v147, 4294901760
    %1491 = vmatprep.subr.mxu0 %v1490
    %v1492 = vand.u32 %v146, 4294901760
    %1493 = vmatpush2.msra.mxu0 %v1492
    %v1494 = vand.u32 %v144, 4294901760
    %1495 = vmatprep.subr.mxu0 %v1494
    %v1496 = vand.u32 %v143, 4294901760
    %1497 = vmatpush2.msra.mxu0 %v1496
    %v1498 = vand.u32 %v221, 4294901760
    %1499 = vmatprep.mubr.f32.mxu0 %v1498
    %v1500 = vand.u32 %v219, 4294901760
    %1501 = vmatmul.mubr.f32.gmra.mxu0 %v1500
    %v1502 = vpop.f32.mrf.mxu0
    %v1503 = vadd.f32 %v1366, %v1502
    %v1504 = vpop.f32.mrf.mxu0
    %v1505 = vadd.f32 %v1368, %v1504
    %1506 = vdwg.mxu0
    %1507 = vmatprep.subr.mxu0 0.0
    %v1508 = vand.u32 %v142, 4294901760
    %1509 = vmatpush1.msra.mxu0 %v1508
    %1510 = vmatprep.subr.mxu0 0.0
    %v1511 = vand.u32 %v139, 4294901760
    %1512 = vmatpush1.msra.mxu0 %v1511
    %1513 = vmatprep.subr.mxu0 0.0
    %v1514 = vand.u32 %v136, 4294901760
    %1515 = vmatpush1.msra.mxu0 %v1514
    %1516 = vmatprep.subr.mxu0 0.0
    %v1517 = vand.u32 %v133, 4294901760
    %1518 = vmatpush1.msra.mxu0 %v1517
    %1519 = vmatprep.subr.mxu0 0.0
    %v1520 = vand.u32 %v130, 4294901760
    %1521 = vmatpush1.msra.mxu0 %v1520
    %1522 = vmatprep.subr.mxu0 0.0
    %v1523 = vand.u32 %v127, 4294901760
    %1524 = vmatpush1.msra.mxu0 %v1523
    %1525 = vmatprep.subr.mxu0 0.0
    %v1526 = vand.u32 %v124, 4294901760
    %1527 = vmatpush1.msra.mxu0 %v1526
    %1528 = vmatprep.subr.mxu0 0.0
    %v1529 = vand.u32 %v121, 4294901760
    %1530 = vmatpush1.msra.mxu0 %v1529
    %1531 = vmatprep.subr.mxu0 0.0
    %v1532 = vand.u32 %v118, 4294901760
    %1533 = vmatpush1.msra.mxu0 %v1532
    %1534 = vmatprep.subr.mxu0 0.0
    %v1535 = vand.u32 %v115, 4294901760
    %1536 = vmatpush1.msra.mxu0 %v1535
    %1537 = vmatprep.subr.mxu0 0.0
    %v1538 = vand.u32 %v112, 4294901760
    %1539 = vmatpush1.msra.mxu0 %v1538
    %1540 = vmatprep.subr.mxu0 0.0
    %v1541 = vand.u32 %v109, 4294901760
    %1542 = vmatpush1.msra.mxu0 %v1541
    %1543 = vmatprep.subr.mxu0 0.0
    %v1544 = vand.u32 %v106, 4294901760
    %1545 = vmatpush1.msra.mxu0 %v1544
    %1546 = vmatprep.subr.mxu0 0.0
    %v1547 = vand.u32 %v103, 4294901760
    %1548 = vmatpush1.msra.mxu0 %v1547
    %1549 = vmatprep.subr.mxu0 0.0
    %v1550 = vand.u32 %v100, 4294901760
    %1551 = vmatpush1.msra.mxu0 %v1550
    %1552 = vmatprep.subr.mxu0 0.0
    %v1553 = vand.u32 %v97, 4294901760
    %1554 = vmatpush1.msra.mxu0 %v1553
    %1555 = vmatprep.subr.mxu0 0.0
    %v1556 = vand.u32 %v190, 4294901760
    %1557 = vmatpush2.msra.mxu0 %v1556
    %1558 = vmatprep.subr.mxu0 0.0
    %v1559 = vand.u32 %v187, 4294901760
    %1560 = vmatpush2.msra.mxu0 %v1559
    %1561 = vmatprep.subr.mxu0 0.0
    %v1562 = vand.u32 %v184, 4294901760
    %1563 = vmatpush2.msra.mxu0 %v1562
    %1564 = vmatprep.subr.mxu0 0.0
    %v1565 = vand.u32 %v181, 4294901760
    %1566 = vmatpush2.msra.mxu0 %v1565
    %1567 = vmatprep.subr.mxu0 0.0
    %v1568 = vand.u32 %v178, 4294901760
    %1569 = vmatpush2.msra.mxu0 %v1568
    %1570 = vmatprep.subr.mxu0 0.0
    %v1571 = vand.u32 %v175, 4294901760
    %1572 = vmatpush2.msra.mxu0 %v1571
    %1573 = vmatprep.subr.mxu0 0.0
    %v1574 = vand.u32 %v172, 4294901760
    %1575 = vmatpush2.msra.mxu0 %v1574
    %1576 = vmatprep.subr.mxu0 0.0
    %v1577 = vand.u32 %v169, 4294901760
    %1578 = vmatpush2.msra.mxu0 %v1577
    %1579 = vmatprep.subr.mxu0 0.0
    %v1580 = vand.u32 %v166, 4294901760
    %1581 = vmatpush2.msra.mxu0 %v1580
    %1582 = vmatprep.subr.mxu0 0.0
    %v1583 = vand.u32 %v163, 4294901760
    %1584 = vmatpush2.msra.mxu0 %v1583
    %1585 = vmatprep.subr.mxu0 0.0
    %v1586 = vand.u32 %v160, 4294901760
    %1587 = vmatpush2.msra.mxu0 %v1586
    %1588 = vmatprep.subr.mxu0 0.0
    %v1589 = vand.u32 %v157, 4294901760
    %1590 = vmatpush2.msra.mxu0 %v1589
    %1591 = vmatprep.subr.mxu0 0.0
    %v1592 = vand.u32 %v154, 4294901760
    %1593 = vmatpush2.msra.mxu0 %v1592
    %1594 = vmatprep.subr.mxu0 0.0
    %v1595 = vand.u32 %v151, 4294901760
    %1596 = vmatpush2.msra.mxu0 %v1595
    %1597 = vmatprep.subr.mxu0 0.0
    %v1598 = vand.u32 %v148, 4294901760
    %1599 = vmatpush2.msra.mxu0 %v1598
    %1600 = vmatprep.subr.mxu0 0.0
    %v1601 = vand.u32 %v145, 4294901760
    %1602 = vmatpush2.msra.mxu0 %v1601
    %v1603 = vand.u32 %v221, 4294901760
    %v1604 = vsub.f32 %v221, %v1603
    %v1605 = vand.u32 %v1604, 4294901760
    %v1606 = vsub.f32 %v1604, %v1605
    %v1607 = vand.u32 %v1606, 4294901760
    %1608 = vmatprep.mubr.f32.mxu0 %v1607
    %v1609 = vand.u32 %v219, 4294901760
    %v1610 = vsub.f32 %v219, %v1609
    %v1611 = vand.u32 %v1610, 4294901760
    %v1612 = vsub.f32 %v1610, %v1611
    %v1613 = vand.u32 %v1612, 4294901760
    %1614 = vmatmul.mubr.f32.gmra.mxu0 %v1613
    %v1615 = vpop.f32.mrf.mxu0
    %v1616 = vadd.f32 0.0, %v1615
    %v1617 = vpop.f32.mrf.mxu0
    %1618 = vdwg.mxu0
    %1619 = vmatprep.subr.mxu0 0.0
    %v1620 = vand.u32 %v142, 4294901760
    %v1621 = vsub.f32 %v142, %v1620
    %v1622 = vand.u32 %v1621, 4294901760
    %v1623 = vsub.f32 %v1621, %v1622
    %v1624 = vand.u32 %v1623, 4294901760
    %1625 = vmatpush1.msra.mxu0 %v1624
    %1626 = vmatprep.subr.mxu0 0.0
    %v1627 = vand.u32 %v139, 4294901760
    %v1628 = vsub.f32 %v139, %v1627
    %v1629 = vand.u32 %v1628, 4294901760
    %v1630 = vsub.f32 %v1628, %v1629
    %v1631 = vand.u32 %v1630, 4294901760
    %1632 = vmatpush1.msra.mxu0 %v1631
    %1633 = vmatprep.subr.mxu0 0.0
    %v1634 = vand.u32 %v136, 4294901760
    %v1635 = vsub.f32 %v136, %v1634
    %v1636 = vand.u32 %v1635, 4294901760
    %v1637 = vsub.f32 %v1635, %v1636
    %v1638 = vand.u32 %v1637, 4294901760
    %1639 = vmatpush1.msra.mxu0 %v1638
    %1640 = vmatprep.subr.mxu0 0.0
    %v1641 = vand.u32 %v133, 4294901760
    %v1642 = vsub.f32 %v133, %v1641
    %v1643 = vand.u32 %v1642, 4294901760
    %v1644 = vsub.f32 %v1642, %v1643
    %v1645 = vand.u32 %v1644, 4294901760
    %1646 = vmatpush1.msra.mxu0 %v1645
    %1647 = vmatprep.subr.mxu0 0.0
    %v1648 = vand.u32 %v130, 4294901760
    %v1649 = vsub.f32 %v130, %v1648
    %v1650 = vand.u32 %v1649, 4294901760
    %v1651 = vsub.f32 %v1649, %v1650
    %v1652 = vand.u32 %v1651, 4294901760
    %1653 = vmatpush1.msra.mxu0 %v1652
    %1654 = vmatprep.subr.mxu0 0.0
    %v1655 = vand.u32 %v127, 4294901760
    %v1656 = vsub.f32 %v127, %v1655
    %v1657 = vand.u32 %v1656, 4294901760
    %v1658 = vsub.f32 %v1656, %v1657
    %v1659 = vand.u32 %v1658, 4294901760
    %1660 = vmatpush1.msra.mxu0 %v1659
    %1661 = vmatprep.subr.mxu0 0.0
    %v1662 = vand.u32 %v124, 4294901760
    %v1663 = vsub.f32 %v124, %v1662
    %v1664 = vand.u32 %v1663, 4294901760
    %v1665 = vsub.f32 %v1663, %v1664
    %v1666 = vand.u32 %v1665, 4294901760
    %1667 = vmatpush1.msra.mxu0 %v1666
    %1668 = vmatprep.subr.mxu0 0.0
    %v1669 = vand.u32 %v121, 4294901760
    %v1670 = vsub.f32 %v121, %v1669
    %v1671 = vand.u32 %v1670, 4294901760
    %v1672 = vsub.f32 %v1670, %v1671
    %v1673 = vand.u32 %v1672, 4294901760
    %1674 = vmatpush1.msra.mxu0 %v1673
    %1675 = vmatprep.subr.mxu0 0.0
    %v1676 = vand.u32 %v118, 4294901760
    %v1677 = vsub.f32 %v118, %v1676
    %v1678 = vand.u32 %v1677, 4294901760
    %v1679 = vsub.f32 %v1677, %v1678
    %v1680 = vand.u32 %v1679, 4294901760
    %1681 = vmatpush1.msra.mxu0 %v1680
    %1682 = vmatprep.subr.mxu0 0.0
    %v1683 = vand.u32 %v115, 4294901760
    %v1684 = vsub.f32 %v115, %v1683
    %v1685 = vand.u32 %v1684, 4294901760
    %v1686 = vsub.f32 %v1684, %v1685
    %v1687 = vand.u32 %v1686, 4294901760
    %1688 = vmatpush1.msra.mxu0 %v1687
    %1689 = vmatprep.subr.mxu0 0.0
    %v1690 = vand.u32 %v112, 4294901760
    %v1691 = vsub.f32 %v112, %v1690
    %v1692 = vand.u32 %v1691, 4294901760
    %v1693 = vsub.f32 %v1691, %v1692
    %v1694 = vand.u32 %v1693, 4294901760
    %1695 = vmatpush1.msra.mxu0 %v1694
    %1696 = vmatprep.subr.mxu0 0.0
    %v1697 = vand.u32 %v109, 4294901760
    %v1698 = vsub.f32 %v109, %v1697
    %v1699 = vand.u32 %v1698, 4294901760
    %v1700 = vsub.f32 %v1698, %v1699
    %v1701 = vand.u32 %v1700, 4294901760
    %1702 = vmatpush1.msra.mxu0 %v1701
    %1703 = vmatprep.subr.mxu0 0.0
    %v1704 = vand.u32 %v106, 4294901760
    %v1705 = vsub.f32 %v106, %v1704
    %v1706 = vand.u32 %v1705, 4294901760
    %v1707 = vsub.f32 %v1705, %v1706
    %v1708 = vand.u32 %v1707, 4294901760
    %1709 = vmatpush1.msra.mxu0 %v1708
    %1710 = vmatprep.subr.mxu0 0.0
    %v1711 = vand.u32 %v103, 4294901760
    %v1712 = vsub.f32 %v103, %v1711
    %v1713 = vand.u32 %v1712, 4294901760
    %v1714 = vsub.f32 %v1712, %v1713
    %v1715 = vand.u32 %v1714, 4294901760
    %1716 = vmatpush1.msra.mxu0 %v1715
    %1717 = vmatprep.subr.mxu0 0.0
    %v1718 = vand.u32 %v100, 4294901760
    %v1719 = vsub.f32 %v100, %v1718
    %v1720 = vand.u32 %v1719, 4294901760
    %v1721 = vsub.f32 %v1719, %v1720
    %v1722 = vand.u32 %v1721, 4294901760
    %1723 = vmatpush1.msra.mxu0 %v1722
    %1724 = vmatprep.subr.mxu0 0.0
    %v1725 = vand.u32 %v97, 4294901760
    %v1726 = vsub.f32 %v97, %v1725
    %v1727 = vand.u32 %v1726, 4294901760
    %v1728 = vsub.f32 %v1726, %v1727
    %v1729 = vand.u32 %v1728, 4294901760
    %1730 = vmatpush1.msra.mxu0 %v1729
    %1731 = vmatprep.subr.mxu0 0.0
    %v1732 = vand.u32 %v190, 4294901760
    %v1733 = vsub.f32 %v190, %v1732
    %v1734 = vand.u32 %v1733, 4294901760
    %v1735 = vsub.f32 %v1733, %v1734
    %v1736 = vand.u32 %v1735, 4294901760
    %1737 = vmatpush2.msra.mxu0 %v1736
    %1738 = vmatprep.subr.mxu0 0.0
    %v1739 = vand.u32 %v187, 4294901760
    %v1740 = vsub.f32 %v187, %v1739
    %v1741 = vand.u32 %v1740, 4294901760
    %v1742 = vsub.f32 %v1740, %v1741
    %v1743 = vand.u32 %v1742, 4294901760
    %1744 = vmatpush2.msra.mxu0 %v1743
    %1745 = vmatprep.subr.mxu0 0.0
    %v1746 = vand.u32 %v184, 4294901760
    %v1747 = vsub.f32 %v184, %v1746
    %v1748 = vand.u32 %v1747, 4294901760
    %v1749 = vsub.f32 %v1747, %v1748
    %v1750 = vand.u32 %v1749, 4294901760
    %1751 = vmatpush2.msra.mxu0 %v1750
    %1752 = vmatprep.subr.mxu0 0.0
    %v1753 = vand.u32 %v181, 4294901760
    %v1754 = vsub.f32 %v181, %v1753
    %v1755 = vand.u32 %v1754, 4294901760
    %v1756 = vsub.f32 %v1754, %v1755
    %v1757 = vand.u32 %v1756, 4294901760
    %1758 = vmatpush2.msra.mxu0 %v1757
    %1759 = vmatprep.subr.mxu0 0.0
    %v1760 = vand.u32 %v178, 4294901760
    %v1761 = vsub.f32 %v178, %v1760
    %v1762 = vand.u32 %v1761, 4294901760
    %v1763 = vsub.f32 %v1761, %v1762
    %v1764 = vand.u32 %v1763, 4294901760
    %1765 = vmatpush2.msra.mxu0 %v1764
    %1766 = vmatprep.subr.mxu0 0.0
    %v1767 = vand.u32 %v175, 4294901760
    %v1768 = vsub.f32 %v175, %v1767
    %v1769 = vand.u32 %v1768, 4294901760
    %v1770 = vsub.f32 %v1768, %v1769
    %v1771 = vand.u32 %v1770, 4294901760
    %1772 = vmatpush2.msra.mxu0 %v1771
    %1773 = vmatprep.subr.mxu0 0.0
    %v1774 = vand.u32 %v172, 4294901760
    %v1775 = vsub.f32 %v172, %v1774
    %v1776 = vand.u32 %v1775, 4294901760
    %v1777 = vsub.f32 %v1775, %v1776
    %v1778 = vand.u32 %v1777, 4294901760
    %1779 = vmatpush2.msra.mxu0 %v1778
    %1780 = vmatprep.subr.mxu0 0.0
    %v1781 = vand.u32 %v169, 4294901760
    %v1782 = vsub.f32 %v169, %v1781
    %v1783 = vand.u32 %v1782, 4294901760
    %v1784 = vsub.f32 %v1782, %v1783
    %v1785 = vand.u32 %v1784, 4294901760
    %1786 = vmatpush2.msra.mxu0 %v1785
    %1787 = vmatprep.subr.mxu0 0.0
    %v1788 = vand.u32 %v166, 4294901760
    %v1789 = vsub.f32 %v166, %v1788
    %v1790 = vand.u32 %v1789, 4294901760
    %v1791 = vsub.f32 %v1789, %v1790
    %v1792 = vand.u32 %v1791, 4294901760
    %1793 = vmatpush2.msra.mxu0 %v1792
    %1794 = vmatprep.subr.mxu0 0.0
    %v1795 = vand.u32 %v163, 4294901760
    %v1796 = vsub.f32 %v163, %v1795
    %v1797 = vand.u32 %v1796, 4294901760
    %v1798 = vsub.f32 %v1796, %v1797
    %v1799 = vand.u32 %v1798, 4294901760
    %1800 = vmatpush2.msra.mxu0 %v1799
    %1801 = vmatprep.subr.mxu0 0.0
    %v1802 = vand.u32 %v160, 4294901760
    %v1803 = vsub.f32 %v160, %v1802
    %v1804 = vand.u32 %v1803, 4294901760
    %v1805 = vsub.f32 %v1803, %v1804
    %v1806 = vand.u32 %v1805, 4294901760
    %1807 = vmatpush2.msra.mxu0 %v1806
    %1808 = vmatprep.subr.mxu0 0.0
    %v1809 = vand.u32 %v157, 4294901760
    %v1810 = vsub.f32 %v157, %v1809
    %v1811 = vand.u32 %v1810, 4294901760
    %v1812 = vsub.f32 %v1810, %v1811
    %v1813 = vand.u32 %v1812, 4294901760
    %1814 = vmatpush2.msra.mxu0 %v1813
    %1815 = vmatprep.subr.mxu0 0.0
    %v1816 = vand.u32 %v154, 4294901760
    %v1817 = vsub.f32 %v154, %v1816
    %v1818 = vand.u32 %v1817, 4294901760
    %v1819 = vsub.f32 %v1817, %v1818
    %v1820 = vand.u32 %v1819, 4294901760
    %1821 = vmatpush2.msra.mxu0 %v1820
    %1822 = vmatprep.subr.mxu0 0.0
    %v1823 = vand.u32 %v151, 4294901760
    %v1824 = vsub.f32 %v151, %v1823
    %v1825 = vand.u32 %v1824, 4294901760
    %v1826 = vsub.f32 %v1824, %v1825
    %v1827 = vand.u32 %v1826, 4294901760
    %1828 = vmatpush2.msra.mxu0 %v1827
    %1829 = vmatprep.subr.mxu0 0.0
    %v1830 = vand.u32 %v148, 4294901760
    %v1831 = vsub.f32 %v148, %v1830
    %v1832 = vand.u32 %v1831, 4294901760
    %v1833 = vsub.f32 %v1831, %v1832
    %v1834 = vand.u32 %v1833, 4294901760
    %1835 = vmatpush2.msra.mxu0 %v1834
    %1836 = vmatprep.subr.mxu0 0.0
    %v1837 = vand.u32 %v145, 4294901760
    %v1838 = vsub.f32 %v145, %v1837
    %v1839 = vand.u32 %v1838, 4294901760
    %v1840 = vsub.f32 %v1838, %v1839
    %v1841 = vand.u32 %v1840, 4294901760
    %1842 = vmatpush2.msra.mxu0 %v1841
    %v1843 = vand.u32 %v221, 4294901760
    %1844 = vmatprep.mubr.f32.mxu0 %v1843
    %v1845 = vand.u32 %v219, 4294901760
    %1846 = vmatmul.mubr.f32.gmra.mxu0 %v1845
    %v1847 = vpop.f32.mrf.mxu0
    %v1848 = vadd.f32 %v1616, %v1847
    %v1849 = vpop.f32.mrf.mxu0
    %1850 = vdwg.mxu0
    %1851 = vmatprep.subr.mxu0 0.0
    %v1852 = vand.u32 %v142, 4294901760
    %v1853 = vsub.f32 %v142, %v1852
    %1854 = vmatpush1.msra.mxu0 %v1853
    %1855 = vmatprep.subr.mxu0 0.0
    %v1856 = vand.u32 %v139, 4294901760
    %v1857 = vsub.f32 %v139, %v1856
    %1858 = vmatpush1.msra.mxu0 %v1857
    %1859 = vmatprep.subr.mxu0 0.0
    %v1860 = vand.u32 %v136, 4294901760
    %v1861 = vsub.f32 %v136, %v1860
    %1862 = vmatpush1.msra.mxu0 %v1861
    %1863 = vmatprep.subr.mxu0 0.0
    %v1864 = vand.u32 %v133, 4294901760
    %v1865 = vsub.f32 %v133, %v1864
    %1866 = vmatpush1.msra.mxu0 %v1865
    %1867 = vmatprep.subr.mxu0 0.0
    %v1868 = vand.u32 %v130, 4294901760
    %v1869 = vsub.f32 %v130, %v1868
    %1870 = vmatpush1.msra.mxu0 %v1869
    %1871 = vmatprep.subr.mxu0 0.0
    %v1872 = vand.u32 %v127, 4294901760
    %v1873 = vsub.f32 %v127, %v1872
    %1874 = vmatpush1.msra.mxu0 %v1873
    %1875 = vmatprep.subr.mxu0 0.0
    %v1876 = vand.u32 %v124, 4294901760
    %v1877 = vsub.f32 %v124, %v1876
    %1878 = vmatpush1.msra.mxu0 %v1877
    %1879 = vmatprep.subr.mxu0 0.0
    %v1880 = vand.u32 %v121, 4294901760
    %v1881 = vsub.f32 %v121, %v1880
    %1882 = vmatpush1.msra.mxu0 %v1881
    %1883 = vmatprep.subr.mxu0 0.0
    %v1884 = vand.u32 %v118, 4294901760
    %v1885 = vsub.f32 %v118, %v1884
    %1886 = vmatpush1.msra.mxu0 %v1885
    %1887 = vmatprep.subr.mxu0 0.0
    %v1888 = vand.u32 %v115, 4294901760
    %v1889 = vsub.f32 %v115, %v1888
    %1890 = vmatpush1.msra.mxu0 %v1889
    %1891 = vmatprep.subr.mxu0 0.0
    %v1892 = vand.u32 %v112, 4294901760
    %v1893 = vsub.f32 %v112, %v1892
    %1894 = vmatpush1.msra.mxu0 %v1893
    %1895 = vmatprep.subr.mxu0 0.0
    %v1896 = vand.u32 %v109, 4294901760
    %v1897 = vsub.f32 %v109, %v1896
    %1898 = vmatpush1.msra.mxu0 %v1897
    %1899 = vmatprep.subr.mxu0 0.0
    %v1900 = vand.u32 %v106, 4294901760
    %v1901 = vsub.f32 %v106, %v1900
    %1902 = vmatpush1.msra.mxu0 %v1901
    %1903 = vmatprep.subr.mxu0 0.0
    %v1904 = vand.u32 %v103, 4294901760
    %v1905 = vsub.f32 %v103, %v1904
    %1906 = vmatpush1.msra.mxu0 %v1905
    %1907 = vmatprep.subr.mxu0 0.0
    %v1908 = vand.u32 %v100, 4294901760
    %v1909 = vsub.f32 %v100, %v1908
    %1910 = vmatpush1.msra.mxu0 %v1909
    %1911 = vmatprep.subr.mxu0 0.0
    %v1912 = vand.u32 %v97, 4294901760
    %v1913 = vsub.f32 %v97, %v1912
    %1914 = vmatpush1.msra.mxu0 %v1913
    %1915 = vmatprep.subr.mxu0 0.0
    %v1916 = vand.u32 %v190, 4294901760
    %v1917 = vsub.f32 %v190, %v1916
    %1918 = vmatpush2.msra.mxu0 %v1917
    %1919 = vmatprep.subr.mxu0 0.0
    %v1920 = vand.u32 %v187, 4294901760
    %v1921 = vsub.f32 %v187, %v1920
    %1922 = vmatpush2.msra.mxu0 %v1921
    %1923 = vmatprep.subr.mxu0 0.0
    %v1924 = vand.u32 %v184, 4294901760
    %v1925 = vsub.f32 %v184, %v1924
    %1926 = vmatpush2.msra.mxu0 %v1925
    %1927 = vmatprep.subr.mxu0 0.0
    %v1928 = vand.u32 %v181, 4294901760
    %v1929 = vsub.f32 %v181, %v1928
    %1930 = vmatpush2.msra.mxu0 %v1929
    %1931 = vmatprep.subr.mxu0 0.0
    %v1932 = vand.u32 %v178, 4294901760
    %v1933 = vsub.f32 %v178, %v1932
    %1934 = vmatpush2.msra.mxu0 %v1933
    %1935 = vmatprep.subr.mxu0 0.0
    %v1936 = vand.u32 %v175, 4294901760
    %v1937 = vsub.f32 %v175, %v1936
    %1938 = vmatpush2.msra.mxu0 %v1937
    %1939 = vmatprep.subr.mxu0 0.0
    %v1940 = vand.u32 %v172, 4294901760
    %v1941 = vsub.f32 %v172, %v1940
    %1942 = vmatpush2.msra.mxu0 %v1941
    %1943 = vmatprep.subr.mxu0 0.0
    %v1944 = vand.u32 %v169, 4294901760
    %v1945 = vsub.f32 %v169, %v1944
    %1946 = vmatpush2.msra.mxu0 %v1945
    %1947 = vmatprep.subr.mxu0 0.0
    %v1948 = vand.u32 %v166, 4294901760
    %v1949 = vsub.f32 %v166, %v1948
    %1950 = vmatpush2.msra.mxu0 %v1949
    %1951 = vmatprep.subr.mxu0 0.0
    %v1952 = vand.u32 %v163, 4294901760
    %v1953 = vsub.f32 %v163, %v1952
    %1954 = vmatpush2.msra.mxu0 %v1953
    %1955 = vmatprep.subr.mxu0 0.0
    %v1956 = vand.u32 %v160, 4294901760
    %v1957 = vsub.f32 %v160, %v1956
    %1958 = vmatpush2.msra.mxu0 %v1957
    %1959 = vmatprep.subr.mxu0 0.0
    %v1960 = vand.u32 %v157, 4294901760
    %v1961 = vsub.f32 %v157, %v1960
    %1962 = vmatpush2.msra.mxu0 %v1961
    %1963 = vmatprep.subr.mxu0 0.0
    %v1964 = vand.u32 %v154, 4294901760
    %v1965 = vsub.f32 %v154, %v1964
    %1966 = vmatpush2.msra.mxu0 %v1965
    %1967 = vmatprep.subr.mxu0 0.0
    %v1968 = vand.u32 %v151, 4294901760
    %v1969 = vsub.f32 %v151, %v1968
    %1970 = vmatpush2.msra.mxu0 %v1969
    %1971 = vmatprep.subr.mxu0 0.0
    %v1972 = vand.u32 %v148, 4294901760
    %v1973 = vsub.f32 %v148, %v1972
    %1974 = vmatpush2.msra.mxu0 %v1973
    %1975 = vmatprep.subr.mxu0 0.0
    %v1976 = vand.u32 %v145, 4294901760
    %v1977 = vsub.f32 %v145, %v1976
    %1978 = vmatpush2.msra.mxu0 %v1977
    %v1979 = vand.u32 %v221, 4294901760
    %v1980 = vsub.f32 %v221, %v1979
    %1981 = vmatprep.mubr.f32.mxu0 %v1980
    %v1982 = vand.u32 %v219, 4294901760
    %v1983 = vsub.f32 %v219, %v1982
    %1984 = vmatmul.mubr.f32.gmra.mxu0 %v1983
    %v1985 = vpop.f32.mrf.mxu0
    %v1986 = vadd.f32 %v1848, %v1985
    %v1987 = vpop.f32.mrf.mxu0
    %1988 = vdwg.mxu0
    %1989 = vmatprep.subr.mxu0 0.0
    %v1990 = vand.u32 %v142, 4294901760
    %1991 = vmatpush1.msra.mxu0 %v1990
    %1992 = vmatprep.subr.mxu0 0.0
    %v1993 = vand.u32 %v139, 4294901760
    %1994 = vmatpush1.msra.mxu0 %v1993
    %1995 = vmatprep.subr.mxu0 0.0
    %v1996 = vand.u32 %v136, 4294901760
    %1997 = vmatpush1.msra.mxu0 %v1996
    %1998 = vmatprep.subr.mxu0 0.0
    %v1999 = vand.u32 %v133, 4294901760
    %2000 = vmatpush1.msra.mxu0 %v1999
    %2001 = vmatprep.subr.mxu0 0.0
    %v2002 = vand.u32 %v130, 4294901760
    %2003 = vmatpush1.msra.mxu0 %v2002
    %2004 = vmatprep.subr.mxu0 0.0
    %v2005 = vand.u32 %v127, 4294901760
    %2006 = vmatpush1.msra.mxu0 %v2005
    %2007 = vmatprep.subr.mxu0 0.0
    %v2008 = vand.u32 %v124, 4294901760
    %2009 = vmatpush1.msra.mxu0 %v2008
    %2010 = vmatprep.subr.mxu0 0.0
    %v2011 = vand.u32 %v121, 4294901760
    %2012 = vmatpush1.msra.mxu0 %v2011
    %2013 = vmatprep.subr.mxu0 0.0
    %v2014 = vand.u32 %v118, 4294901760
    %2015 = vmatpush1.msra.mxu0 %v2014
    %2016 = vmatprep.subr.mxu0 0.0
    %v2017 = vand.u32 %v115, 4294901760
    %2018 = vmatpush1.msra.mxu0 %v2017
    %2019 = vmatprep.subr.mxu0 0.0
    %v2020 = vand.u32 %v112, 4294901760
    %2021 = vmatpush1.msra.mxu0 %v2020
    %2022 = vmatprep.subr.mxu0 0.0
    %v2023 = vand.u32 %v109, 4294901760
    %2024 = vmatpush1.msra.mxu0 %v2023
    %2025 = vmatprep.subr.mxu0 0.0
    %v2026 = vand.u32 %v106, 4294901760
    %2027 = vmatpush1.msra.mxu0 %v2026
    %2028 = vmatprep.subr.mxu0 0.0
    %v2029 = vand.u32 %v103, 4294901760
    %2030 = vmatpush1.msra.mxu0 %v2029
    %2031 = vmatprep.subr.mxu0 0.0
    %v2032 = vand.u32 %v100, 4294901760
    %2033 = vmatpush1.msra.mxu0 %v2032
    %2034 = vmatprep.subr.mxu0 0.0
    %v2035 = vand.u32 %v97, 4294901760
    %2036 = vmatpush1.msra.mxu0 %v2035
    %2037 = vmatprep.subr.mxu0 0.0
    %v2038 = vand.u32 %v190, 4294901760
    %2039 = vmatpush2.msra.mxu0 %v2038
    %2040 = vmatprep.subr.mxu0 0.0
    %v2041 = vand.u32 %v187, 4294901760
    %2042 = vmatpush2.msra.mxu0 %v2041
    %2043 = vmatprep.subr.mxu0 0.0
    %v2044 = vand.u32 %v184, 4294901760
    %2045 = vmatpush2.msra.mxu0 %v2044
    %2046 = vmatprep.subr.mxu0 0.0
    %v2047 = vand.u32 %v181, 4294901760
    %2048 = vmatpush2.msra.mxu0 %v2047
    %2049 = vmatprep.subr.mxu0 0.0
    %v2050 = vand.u32 %v178, 4294901760
    %2051 = vmatpush2.msra.mxu0 %v2050
    %2052 = vmatprep.subr.mxu0 0.0
    %v2053 = vand.u32 %v175, 4294901760
    %2054 = vmatpush2.msra.mxu0 %v2053
    %2055 = vmatprep.subr.mxu0 0.0
    %v2056 = vand.u32 %v172, 4294901760
    %2057 = vmatpush2.msra.mxu0 %v2056
    %2058 = vmatprep.subr.mxu0 0.0
    %v2059 = vand.u32 %v169, 4294901760
    %2060 = vmatpush2.msra.mxu0 %v2059
    %2061 = vmatprep.subr.mxu0 0.0
    %v2062 = vand.u32 %v166, 4294901760
    %2063 = vmatpush2.msra.mxu0 %v2062
    %2064 = vmatprep.subr.mxu0 0.0
    %v2065 = vand.u32 %v163, 4294901760
    %2066 = vmatpush2.msra.mxu0 %v2065
    %2067 = vmatprep.subr.mxu0 0.0
    %v2068 = vand.u32 %v160, 4294901760
    %2069 = vmatpush2.msra.mxu0 %v2068
    %2070 = vmatprep.subr.mxu0 0.0
    %v2071 = vand.u32 %v157, 4294901760
    %2072 = vmatpush2.msra.mxu0 %v2071
    %2073 = vmatprep.subr.mxu0 0.0
    %v2074 = vand.u32 %v154, 4294901760
    %2075 = vmatpush2.msra.mxu0 %v2074
    %2076 = vmatprep.subr.mxu0 0.0
    %v2077 = vand.u32 %v151, 4294901760
    %2078 = vmatpush2.msra.mxu0 %v2077
    %2079 = vmatprep.subr.mxu0 0.0
    %v2080 = vand.u32 %v148, 4294901760
    %2081 = vmatpush2.msra.mxu0 %v2080
    %2082 = vmatprep.subr.mxu0 0.0
    %v2083 = vand.u32 %v145, 4294901760
    %2084 = vmatpush2.msra.mxu0 %v2083
    %v2085 = vand.u32 %v221, 4294901760
    %v2086 = vsub.f32 %v221, %v2085
    %v2087 = vand.u32 %v2086, 4294901760
    %2088 = vmatprep.mubr.f32.mxu0 %v2087
    %v2089 = vand.u32 %v219, 4294901760
    %v2090 = vsub.f32 %v219, %v2089
    %v2091 = vand.u32 %v2090, 4294901760
    %2092 = vmatmul.mubr.f32.gmra.mxu0 %v2091
    %v2093 = vpop.f32.mrf.mxu0
    %v2094 = vadd.f32 %v1986, %v2093
    %v2095 = vpop.f32.mrf.mxu0
    %2096 = vdwg.mxu0
    %2097 = vmatprep.subr.mxu0 0.0
    %v2098 = vand.u32 %v142, 4294901760
    %v2099 = vsub.f32 %v142, %v2098
    %v2100 = vand.u32 %v2099, 4294901760
    %2101 = vmatpush1.msra.mxu0 %v2100
    %2102 = vmatprep.subr.mxu0 0.0
    %v2103 = vand.u32 %v139, 4294901760
    %v2104 = vsub.f32 %v139, %v2103
    %v2105 = vand.u32 %v2104, 4294901760
    %2106 = vmatpush1.msra.mxu0 %v2105
    %2107 = vmatprep.subr.mxu0 0.0
    %v2108 = vand.u32 %v136, 4294901760
    %v2109 = vsub.f32 %v136, %v2108
    %v2110 = vand.u32 %v2109, 4294901760
    %2111 = vmatpush1.msra.mxu0 %v2110
    %2112 = vmatprep.subr.mxu0 0.0
    %v2113 = vand.u32 %v133, 4294901760
    %v2114 = vsub.f32 %v133, %v2113
    %v2115 = vand.u32 %v2114, 4294901760
    %2116 = vmatpush1.msra.mxu0 %v2115
    %2117 = vmatprep.subr.mxu0 0.0
    %v2118 = vand.u32 %v130, 4294901760
    %v2119 = vsub.f32 %v130, %v2118
    %v2120 = vand.u32 %v2119, 4294901760
    %2121 = vmatpush1.msra.mxu0 %v2120
    %2122 = vmatprep.subr.mxu0 0.0
    %v2123 = vand.u32 %v127, 4294901760
    %v2124 = vsub.f32 %v127, %v2123
    %v2125 = vand.u32 %v2124, 4294901760
    %2126 = vmatpush1.msra.mxu0 %v2125
    %2127 = vmatprep.subr.mxu0 0.0
    %v2128 = vand.u32 %v124, 4294901760
    %v2129 = vsub.f32 %v124, %v2128
    %v2130 = vand.u32 %v2129, 4294901760
    %2131 = vmatpush1.msra.mxu0 %v2130
    %2132 = vmatprep.subr.mxu0 0.0
    %v2133 = vand.u32 %v121, 4294901760
    %v2134 = vsub.f32 %v121, %v2133
    %v2135 = vand.u32 %v2134, 4294901760
    %2136 = vmatpush1.msra.mxu0 %v2135
    %2137 = vmatprep.subr.mxu0 0.0
    %v2138 = vand.u32 %v118, 4294901760
    %v2139 = vsub.f32 %v118, %v2138
    %v2140 = vand.u32 %v2139, 4294901760
    %2141 = vmatpush1.msra.mxu0 %v2140
    %2142 = vmatprep.subr.mxu0 0.0
    %v2143 = vand.u32 %v115, 4294901760
    %v2144 = vsub.f32 %v115, %v2143
    %v2145 = vand.u32 %v2144, 4294901760
    %2146 = vmatpush1.msra.mxu0 %v2145
    %2147 = vmatprep.subr.mxu0 0.0
    %v2148 = vand.u32 %v112, 4294901760
    %v2149 = vsub.f32 %v112, %v2148
    %v2150 = vand.u32 %v2149, 4294901760
    %2151 = vmatpush1.msra.mxu0 %v2150
    %2152 = vmatprep.subr.mxu0 0.0
    %v2153 = vand.u32 %v109, 4294901760
    %v2154 = vsub.f32 %v109, %v2153
    %v2155 = vand.u32 %v2154, 4294901760
    %2156 = vmatpush1.msra.mxu0 %v2155
    %2157 = vmatprep.subr.mxu0 0.0
    %v2158 = vand.u32 %v106, 4294901760
    %v2159 = vsub.f32 %v106, %v2158
    %v2160 = vand.u32 %v2159, 4294901760
    %2161 = vmatpush1.msra.mxu0 %v2160
    %2162 = vmatprep.subr.mxu0 0.0
    %v2163 = vand.u32 %v103, 4294901760
    %v2164 = vsub.f32 %v103, %v2163
    %v2165 = vand.u32 %v2164, 4294901760
    %2166 = vmatpush1.msra.mxu0 %v2165
    %2167 = vmatprep.subr.mxu0 0.0
    %v2168 = vand.u32 %v100, 4294901760
    %v2169 = vsub.f32 %v100, %v2168
    %v2170 = vand.u32 %v2169, 4294901760
    %2171 = vmatpush1.msra.mxu0 %v2170
    %2172 = vmatprep.subr.mxu0 0.0
    %v2173 = vand.u32 %v97, 4294901760
    %v2174 = vsub.f32 %v97, %v2173
    %v2175 = vand.u32 %v2174, 4294901760
    %2176 = vmatpush1.msra.mxu0 %v2175
    %2177 = vmatprep.subr.mxu0 0.0
    %v2178 = vand.u32 %v190, 4294901760
    %v2179 = vsub.f32 %v190, %v2178
    %v2180 = vand.u32 %v2179, 4294901760
    %2181 = vmatpush2.msra.mxu0 %v2180
    %2182 = vmatprep.subr.mxu0 0.0
    %v2183 = vand.u32 %v187, 4294901760
    %v2184 = vsub.f32 %v187, %v2183
    %v2185 = vand.u32 %v2184, 4294901760
    %2186 = vmatpush2.msra.mxu0 %v2185
    %2187 = vmatprep.subr.mxu0 0.0
    %v2188 = vand.u32 %v184, 4294901760
    %v2189 = vsub.f32 %v184, %v2188
    %v2190 = vand.u32 %v2189, 4294901760
    %2191 = vmatpush2.msra.mxu0 %v2190
    %2192 = vmatprep.subr.mxu0 0.0
    %v2193 = vand.u32 %v181, 4294901760
    %v2194 = vsub.f32 %v181, %v2193
    %v2195 = vand.u32 %v2194, 4294901760
    %2196 = vmatpush2.msra.mxu0 %v2195
    %2197 = vmatprep.subr.mxu0 0.0
    %v2198 = vand.u32 %v178, 4294901760
    %v2199 = vsub.f32 %v178, %v2198
    %v2200 = vand.u32 %v2199, 4294901760
    %2201 = vmatpush2.msra.mxu0 %v2200
    %2202 = vmatprep.subr.mxu0 0.0
    %v2203 = vand.u32 %v175, 4294901760
    %v2204 = vsub.f32 %v175, %v2203
    %v2205 = vand.u32 %v2204, 4294901760
    %2206 = vmatpush2.msra.mxu0 %v2205
    %2207 = vmatprep.subr.mxu0 0.0
    %v2208 = vand.u32 %v172, 4294901760
    %v2209 = vsub.f32 %v172, %v2208
    %v2210 = vand.u32 %v2209, 4294901760
    %2211 = vmatpush2.msra.mxu0 %v2210
    %2212 = vmatprep.subr.mxu0 0.0
    %v2213 = vand.u32 %v169, 4294901760
    %v2214 = vsub.f32 %v169, %v2213
    %v2215 = vand.u32 %v2214, 4294901760
    %2216 = vmatpush2.msra.mxu0 %v2215
    %2217 = vmatprep.subr.mxu0 0.0
    %v2218 = vand.u32 %v166, 4294901760
    %v2219 = vsub.f32 %v166, %v2218
    %v2220 = vand.u32 %v2219, 4294901760
    %2221 = vmatpush2.msra.mxu0 %v2220
    %2222 = vmatprep.subr.mxu0 0.0
    %v2223 = vand.u32 %v163, 4294901760
    %v2224 = vsub.f32 %v163, %v2223
    %v2225 = vand.u32 %v2224, 4294901760
    %2226 = vmatpush2.msra.mxu0 %v2225
    %2227 = vmatprep.subr.mxu0 0.0
    %v2228 = vand.u32 %v160, 4294901760
    %v2229 = vsub.f32 %v160, %v2228
    %v2230 = vand.u32 %v2229, 4294901760
    %2231 = vmatpush2.msra.mxu0 %v2230
    %2232 = vmatprep.subr.mxu0 0.0
    %v2233 = vand.u32 %v157, 4294901760
    %v2234 = vsub.f32 %v157, %v2233
    %v2235 = vand.u32 %v2234, 4294901760
    %2236 = vmatpush2.msra.mxu0 %v2235
    %2237 = vmatprep.subr.mxu0 0.0
    %v2238 = vand.u32 %v154, 4294901760
    %v2239 = vsub.f32 %v154, %v2238
    %v2240 = vand.u32 %v2239, 4294901760
    %2241 = vmatpush2.msra.mxu0 %v2240
    %2242 = vmatprep.subr.mxu0 0.0
    %v2243 = vand.u32 %v151, 4294901760
    %v2244 = vsub.f32 %v151, %v2243
    %v2245 = vand.u32 %v2244, 4294901760
    %2246 = vmatpush2.msra.mxu0 %v2245
    %2247 = vmatprep.subr.mxu0 0.0
    %v2248 = vand.u32 %v148, 4294901760
    %v2249 = vsub.f32 %v148, %v2248
    %v2250 = vand.u32 %v2249, 4294901760
    %2251 = vmatpush2.msra.mxu0 %v2250
    %2252 = vmatprep.subr.mxu0 0.0
    %v2253 = vand.u32 %v145, 4294901760
    %v2254 = vsub.f32 %v145, %v2253
    %v2255 = vand.u32 %v2254, 4294901760
    %2256 = vmatpush2.msra.mxu0 %v2255
    %v2257 = vand.u32 %v221, 4294901760
    %2258 = vmatprep.mubr.f32.mxu0 %v2257
    %v2259 = vand.u32 %v219, 4294901760
    %2260 = vmatmul.mubr.f32.gmra.mxu0 %v2259
    %v2261 = vpop.f32.mrf.mxu0
    %v2262 = vadd.f32 %v2094, %v2261
    %v2263 = vpop.f32.mrf.mxu0
    %2264 = vdwg.mxu0
    %2265 = vmatprep.subr.mxu0 0.0
    %v2266 = vand.u32 %v142, 4294901760
    %2267 = vmatpush1.msra.mxu0 %v2266
    %2268 = vmatprep.subr.mxu0 0.0
    %v2269 = vand.u32 %v139, 4294901760
    %2270 = vmatpush1.msra.mxu0 %v2269
    %2271 = vmatprep.subr.mxu0 0.0
    %v2272 = vand.u32 %v136, 4294901760
    %2273 = vmatpush1.msra.mxu0 %v2272
    %2274 = vmatprep.subr.mxu0 0.0
    %v2275 = vand.u32 %v133, 4294901760
    %2276 = vmatpush1.msra.mxu0 %v2275
    %2277 = vmatprep.subr.mxu0 0.0
    %v2278 = vand.u32 %v130, 4294901760
    %2279 = vmatpush1.msra.mxu0 %v2278
    %2280 = vmatprep.subr.mxu0 0.0
    %v2281 = vand.u32 %v127, 4294901760
    %2282 = vmatpush1.msra.mxu0 %v2281
    %2283 = vmatprep.subr.mxu0 0.0
    %v2284 = vand.u32 %v124, 4294901760
    %2285 = vmatpush1.msra.mxu0 %v2284
    %2286 = vmatprep.subr.mxu0 0.0
    %v2287 = vand.u32 %v121, 4294901760
    %2288 = vmatpush1.msra.mxu0 %v2287
    %2289 = vmatprep.subr.mxu0 0.0
    %v2290 = vand.u32 %v118, 4294901760
    %2291 = vmatpush1.msra.mxu0 %v2290
    %2292 = vmatprep.subr.mxu0 0.0
    %v2293 = vand.u32 %v115, 4294901760
    %2294 = vmatpush1.msra.mxu0 %v2293
    %2295 = vmatprep.subr.mxu0 0.0
    %v2296 = vand.u32 %v112, 4294901760
    %2297 = vmatpush1.msra.mxu0 %v2296
    %2298 = vmatprep.subr.mxu0 0.0
    %v2299 = vand.u32 %v109, 4294901760
    %2300 = vmatpush1.msra.mxu0 %v2299
    %2301 = vmatprep.subr.mxu0 0.0
    %v2302 = vand.u32 %v106, 4294901760
    %2303 = vmatpush1.msra.mxu0 %v2302
    %2304 = vmatprep.subr.mxu0 0.0
    %v2305 = vand.u32 %v103, 4294901760
    %2306 = vmatpush1.msra.mxu0 %v2305
    %2307 = vmatprep.subr.mxu0 0.0
    %v2308 = vand.u32 %v100, 4294901760
    %2309 = vmatpush1.msra.mxu0 %v2308
    %2310 = vmatprep.subr.mxu0 0.0
    %v2311 = vand.u32 %v97, 4294901760
    %2312 = vmatpush1.msra.mxu0 %v2311
    %2313 = vmatprep.subr.mxu0 0.0
    %v2314 = vand.u32 %v190, 4294901760
    %2315 = vmatpush2.msra.mxu0 %v2314
    %2316 = vmatprep.subr.mxu0 0.0
    %v2317 = vand.u32 %v187, 4294901760
    %2318 = vmatpush2.msra.mxu0 %v2317
    %2319 = vmatprep.subr.mxu0 0.0
    %v2320 = vand.u32 %v184, 4294901760
    %2321 = vmatpush2.msra.mxu0 %v2320
    %2322 = vmatprep.subr.mxu0 0.0
    %v2323 = vand.u32 %v181, 4294901760
    %2324 = vmatpush2.msra.mxu0 %v2323
    %2325 = vmatprep.subr.mxu0 0.0
    %v2326 = vand.u32 %v178, 4294901760
    %2327 = vmatpush2.msra.mxu0 %v2326
    %2328 = vmatprep.subr.mxu0 0.0
    %v2329 = vand.u32 %v175, 4294901760
    %2330 = vmatpush2.msra.mxu0 %v2329
    %2331 = vmatprep.subr.mxu0 0.0
    %v2332 = vand.u32 %v172, 4294901760
    %2333 = vmatpush2.msra.mxu0 %v2332
    %2334 = vmatprep.subr.mxu0 0.0
    %v2335 = vand.u32 %v169, 4294901760
    %2336 = vmatpush2.msra.mxu0 %v2335
    %2337 = vmatprep.subr.mxu0 0.0
    %v2338 = vand.u32 %v166, 4294901760
    %2339 = vmatpush2.msra.mxu0 %v2338
    %2340 = vmatprep.subr.mxu0 0.0
    %v2341 = vand.u32 %v163, 4294901760
    %2342 = vmatpush2.msra.mxu0 %v2341
    %2343 = vmatprep.subr.mxu0 0.0
    %v2344 = vand.u32 %v160, 4294901760
    %2345 = vmatpush2.msra.mxu0 %v2344
    %2346 = vmatprep.subr.mxu0 0.0
    %v2347 = vand.u32 %v157, 4294901760
    %2348 = vmatpush2.msra.mxu0 %v2347
    %2349 = vmatprep.subr.mxu0 0.0
    %v2350 = vand.u32 %v154, 4294901760
    %2351 = vmatpush2.msra.mxu0 %v2350
    %2352 = vmatprep.subr.mxu0 0.0
    %v2353 = vand.u32 %v151, 4294901760
    %2354 = vmatpush2.msra.mxu0 %v2353
    %2355 = vmatprep.subr.mxu0 0.0
    %v2356 = vand.u32 %v148, 4294901760
    %2357 = vmatpush2.msra.mxu0 %v2356
    %2358 = vmatprep.subr.mxu0 0.0
    %v2359 = vand.u32 %v145, 4294901760
    %2360 = vmatpush2.msra.mxu0 %v2359
    %v2361 = vand.u32 %v221, 4294901760
    %2362 = vmatprep.mubr.f32.mxu0 %v2361
    %v2363 = vand.u32 %v219, 4294901760
    %2364 = vmatmul.mubr.f32.gmra.mxu0 %v2363
    %v2365 = vpop.f32.mrf.mxu0
    %v2366 = vadd.f32 %v2262, %v2365
    %v2367 = vpop.f32.mrf.mxu0
    %2368 = vdwg.mxu0
    %v2369 = vmul.f32 %v1503, %v1503
    %v2370 = vmul.f32 %v1505, %v1505
    %v2371 = vmul.f32 %v2366, %v2366
    %vm2372 = vcmask 1043456
    %v2373 = vsel %vm2372, %v2369, 0.0
    %2374 = vadd.xlane.f32.xlu0 %v2373
    %v2375 = vpop.xlane.xlu0 %2374
    %v2376 = vrsqrt.pop %v2375
    %v2377 = vmul.f32 %v2375, %v2376
    %vm2378 = vcmp.eq.f32.partialorder %v2375, inf
    %v2379 = vsel %vm2378, %v2375, %v2377
    %vm2380 = vcmp.eq.f32.partialorder %v2375, 0.0
    %v2381 = vand.u32 %v2375, 2147483648
    %v2382 = vsel %vm2380, %v2381, %v2379
    %v2383 = vsel %vm2372, %v2370, 0.0
    %2384 = vadd.xlane.f32.xlu0 %v2383
    %v2385 = vpop.xlane.xlu0 %2384
    %v2386 = vrsqrt.pop %v2385
    %v2387 = vmul.f32 %v2385, %v2386
    %vm2388 = vcmp.eq.f32.partialorder %v2385, inf
    %v2389 = vsel %vm2388, %v2385, %v2387
    %vm2390 = vcmp.eq.f32.partialorder %v2385, 0.0
    %v2391 = vand.u32 %v2385, 2147483648
    %v2392 = vsel %vm2390, %v2391, %v2389
    %v2393 = vsel %vm2372, %v2371, 0.0
    %2394 = vadd.xlane.f32.xlu0 %v2393
    %v2395 = vpop.xlane.xlu0 %2394
    %v2396 = vrsqrt.pop %v2395
    %v2397 = vmul.f32 %v2395, %v2396
    %vm2398 = vcmp.eq.f32.partialorder %v2395, inf
    %v2399 = vsel %vm2398, %v2395, %v2397
    %vm2400 = vcmp.eq.f32.partialorder %v2395, 0.0
    %v2401 = vand.u32 %v2395, 2147483648
    %v2402 = vsel %vm2400, %v2401, %v2399
    %v2403 = vlaneseq
    %v2404 = vshrl.u32 %v2403, 7
    %v2405 = vsub.s32 0, %v2404
    %v2406 = vrot.slane %v192, %v2405
    %v2407 = vmul.f32 %v2382, %v2406
    %v2408 = vlaneseq
    %v2409 = vshrl.u32 %v2408, 7
    %v2410 = vsub.s32 1, %v2409
    %v2411 = vrot.slane %v192, %v2410
    %v2412 = vmul.f32 %v2392, %v2411
    %v2413 = vadd.f32 %v2407, %v2412
    %v2414 = vlaneseq
    %v2415 = vshrl.u32 %v2414, 7
    %v2416 = vsub.s32 2, %v2415
    %v2417 = vrot.slane %v192, %v2416
    %v2418 = vmul.f32 %v2402, %v2417
    %v2419 = vadd.f32 %v2413, %v2418
    %v2420 = vlaneseq
    %v2421 = vshrl.u32 %v2420, 7
    %v2422 = vsub.s32 3, %v2421
    %v2423 = vrot.slane %v192, %v2422
    %v2424 = vadd.f32 %v2419, %v2423
    %v2425 = vlaneseq
    %v2426 = vshrl.u32 %v2425, 7
    %v2427 = vsub.s32 0, %v2426
    %v2428 = vrot.slane %v191, %v2427
    %v2429 = vmul.f32 %v94, %v2428
    %v2430 = vsub.f32 1.0, %v94
    %v2431 = vlaneseq
    %v2432 = vshrl.u32 %v2431, 7
    %v2433 = vsub.s32 1, %v2432
    %v2434 = vrot.slane %v191, %v2433
    %v2435 = vmul.f32 %v2430, %v2434
    %v2436 = vadd.f32 %v2429, %v2435
    %v2437 = vsub.f32 %v216, %v218
    %v2438 = vand.u32 2147483647, %v2437
    %v2439 = vadd.f32 %v2424, %v2436
    %v2440 = vmul.f32 %v2438, %v2439
    %v2441 = vmul.f32 %v192, 1e-06
    %v2442 = vlaneseq
    %v2443 = vshrl.u32 %v2442, 7
    %v2444 = vsub.s32 4, %v2443
    %v2445 = vrot.slane %v2441, %v2444
    %v2446 = vadd.f32 %v2440, %v2445
    %v2447 = vsel %vm2372, %v2446, -inf
    %2448 = vmax.xlane.f32.xlu0 %v2447
    %v2449 = vpop.xlane.xlu0 %2448
    %v2450 = vrcp.pop %v2449
    %v2451 = vmul.f32 %v2446, %v2450
    %v2452 = vsub.f32 %v90, %v91
    %v2453 = vmul.f32 %v2451, %v2452
    %v2454 = vmul.f32 %v2453, %v2452
    %v2455 = vsel %vm2372, %v2454, 0.0
    %2456 = vadd.xlane.f32.xlu0 %v2455
    %v2457 = vpop.xlane.xlu0 %2456
    %v2458 = vrot.slane %v2457, 4
    %v2459 = vadd.f32 %v2457, %v2458
    %v2460 = vrot.slane %v2459, 2
    %v2461 = vadd.f32 %v2459, %v2460
    %v2462 = vrot.slane %v2461, 1
    %v2463 = vadd.f32 %v2461, %v2462
    %s2464 = vtos %v2463
    %v2465 = vstv %s2464
    %v2466 = vmul.f32 %v2465, 0.008064516
    %2467 = vst [vmem:[#allocation11] sm:$0xff] %v2466
    // Predicated region
    $region54: #{tpu_custom_call.1} parent=1 // pred_check
      _
    $region55: #{tpu_custom_call.1} parent=1 // pred_check_branch
      %2469 = sbr.rel (0) target = $region57
    $region56: #{tpu_custom_call.1} parent=1 // pred_region
      %s2471 = ssub.s32 128, 128
      %2472 = vsyncadd [#allocation4], %s2471
      %s2474 = sshll.u32 [#allocation11], 4
      %s2475 = int_to_ptr.vmem [resolvable:$true] %s2474
      %2477 = dma.vmem_to_hbm [thread:$0]  %s2475, 128, %s8, [#allocation4]
    $region57: #{tpu_custom_call.1} parent=1 // pred_fallthru
      _
    // Predicated region
    $region58: #{tpu_custom_call.1} parent=1 // pred_check
      _
    $region59: #{tpu_custom_call.1} parent=1 // pred_check_branch
      %2479 = sbr.rel (0) target = $region61
    $region60: #{tpu_custom_call.1} parent=1 // pred_region
      %2480 = dma.done [#allocation4], 128
    $region61: #{tpu_custom_call.1} parent=1 // pred_fallthru
      _
    %2481 = vsyncpa [#allocation3], 1
    %2482 = vsyncpa [#allocation6], 1
    %2483 = vsyncpa [#allocation9], 1
    %2484 = vsyncpa [#allocation4], 1

</llo_original>
